<compile_context>
chip_gen: v7x
topology: tpu7x:2x2x1
jax: 0.10.0
libtpu: 0.0.40
codegen_flags: <defaults>
</compile_context>

<pallas_src>
import jax
import jax.numpy as jnp
from jax.experimental import pallas as pl
from jax.experimental.pallas import tpu as pltpu

H1 = 400     # hidden width of l1 / l4
H1P = 512    # lane-aligned (4*128) per-head column stride inside fused layer-1 output
H2 = 300     # hidden width of l2 / l5
DP = 128     # lane-padded input width for the packed [state|z] operand


def decoder_critic_kernel(
    x_ref,                 # [TB, DP]        f32  packed [state|z] (zero-padded)
    w14_ref, b14_ref,      # [DP, 2*H1P],    [1, 2*H1P]   fused layer 1 (both heads)
    w25_ref, b25_ref,      # [2, H1, H2],    [2, 1, H2]   stacked layer 2
    w36_ref, b36_ref,      # [2, 1, H2],     [1, 2]       layer 3 as row vectors
    q_ref,                 # [TB, 2]  (col 0 = q1, col 1 = q2)
):
    f32 = jnp.float32
    x = x_ref[...]  # activations stay f32 throughout

    # ----- Layer 1: both heads fused along lanes, single K=128 matmul -----
    h = (jnp.dot(x, w14_ref[...].astype(f32), preferred_element_type=f32)
         + b14_ref[...])
    h = jnp.maximum(h, 0.0)
    h1 = h[:, :H1]               # head-1 block (lane-aligned start 0)
    h2 = h[:, H1P:H1P + H1]      # head-2 block (lane-aligned start 512)

    # ----- Layer 2: per head (weights upcast in-register; f32 accumulation) -----
    g1 = jnp.maximum(
        jnp.dot(h1, w25_ref[0].astype(f32), preferred_element_type=f32)
        + b25_ref[0], 0.0)
    g2 = jnp.maximum(
        jnp.dot(h2, w25_ref[1].astype(f32), preferred_element_type=f32)
        + b25_ref[1], 0.0)

    # ----- Layer 3: lane reductions (XLU) into one fused [TB, 2] store -----
    q1c = jnp.sum(g1 * w36_ref[0].astype(f32), axis=-1, keepdims=True)
    q2c = jnp.sum(g2 * w36_ref[1].astype(f32), axis=-1, keepdims=True)
    q_ref[...] = (jnp.concatenate([q1c, q2c], axis=1) + b36_ref[...]).astype(q_ref.dtype)


def _pad_cols(w, width):
    return jnp.pad(w, ((0, 0), (0, width - w.shape[1])))


def _round_up(x, m):
    return ((x + m - 1) // m) * m


def pack_params(params, state_dim, latent_dim, weights_dtype=jnp.bfloat16):
    """One-time (outside the hot path) repack of torch-style layer params.

    Weights come in as [in_features, out_features] (transposed vs. torch),
    biases as [1, out_features].  Biases stay f32; weights default to bf16
    storage (upcast in-register inside the kernel).
    """
    d = state_dim + latent_dim
    assert d <= DP
    # Fused layer 1 (both heads), rows padded to DP=128 for a K-aligned matmul.
    w14 = jnp.concatenate(
        [_pad_cols(params["w1"], H1P), _pad_cols(params["w4"], H1P)], axis=1)  # [D, 2*H1P]
    w14 = jnp.pad(w14, ((0, DP - d), (0, 0)))                                   # [DP, 2*H1P]
    b14 = jnp.concatenate(
        [_pad_cols(params["b1"], H1P), _pad_cols(params["b4"], H1P)], axis=1)  # [1, 2*H1P]
    # Stacked layer 2 (dominant weight bytes; no block-diagonalization).
    w25 = jnp.stack([params["w2"], params["w5"]], axis=0)                       # [2, H1, H2]
    b25 = jnp.stack([params["b2"], params["b5"]], axis=0)                       # [2, 1, H2]
    # Layer 3 as dense row vectors (avoids lane-padded [2,300,2] slabs).
    w36 = jnp.stack([params["w3"].T, params["w6"].T], axis=0)                   # [2, 1, H2]
    b36 = jnp.concatenate([params["b3"], params["b6"]], axis=1)                 # [1, 2]
    return dict(
        w14=w14.astype(weights_dtype),
        b14=b14.astype(jnp.float32),
        w25=w25.astype(weights_dtype),
        b25=b25.astype(jnp.float32),
        w36=w36.astype(weights_dtype),
        b36=b36.astype(jnp.float32),
    )


def decoder_critic_forward(state, z, packed):
    """Pallas equivalent of DecoderCritic.forward(state, z) -> (q1, q2)."""
    b = state.shape[0]
    d = state.shape[1] + z.shape[1]
    assert d <= DP

    # Host-side pack: one dense, lane-padded [B, 128] operand.
    x = jnp.concatenate([state, z], axis=1).astype(jnp.float32)
    x = jnp.pad(x, ((0, 0), (0, DP - d)))

    # Batch tile: >=256 rows once the batch is large (amortize per-step cost),
    # otherwise the smallest sublane-aligned tile that covers the batch.
    tb = 256 if b >= 256 else max(8, _round_up(b, 8))
    b_pad = _round_up(b, tb)
    if b_pad != b:
        x = jnp.pad(x, ((0, b_pad - b), (0, 0)))
    grid = (b_pad // tb,)

    q = pl.pallas_call(
        decoder_critic_kernel,
        out_shape=jax.ShapeDtypeStruct((b_pad, 2), jnp.float32),
        grid=grid,
        in_specs=[
            pl.BlockSpec((tb, DP), lambda i: (i, 0)),          # activations: stream per step
            pl.BlockSpec((DP, 2 * H1P), lambda i: (0, 0)),      # weights: VMEM-resident
            pl.BlockSpec((1, 2 * H1P), lambda i: (0, 0)),
            pl.BlockSpec((2, H1, H2), lambda i: (0, 0, 0)),
            pl.BlockSpec((2, 1, H2), lambda i: (0, 0, 0)),
            pl.BlockSpec((2, 1, H2), lambda i: (0, 0, 0)),
            pl.BlockSpec((1, 2), lambda i: (0, 0)),
        ],
        out_specs=pl.BlockSpec((tb, 2), lambda i: (i, 0)),
        compiler_params=pltpu.CompilerParams(
            dimension_semantics=("parallel",)),                 # megacore shard on v7x
    )(x, packed["w14"], packed["b14"], packed["w25"], packed["b25"],
      packed["w36"], packed["b36"])

    q = q[:b]
    return q[:, 0:1], q[:, 1:2]


# ----------------------------------------------------------------------------
# Reference / test scaffolding
# ----------------------------------------------------------------------------
def init_params(key, state_dim, latent_dim):
    """torch.nn.Linear-style init (U[-1/sqrt(fan_in), 1/sqrt(fan_in)]).
    Weights stored as [in_features, out_features]; biases as [1, out_features]."""
    dims = [
        (state_dim + latent_dim, 400),  # l1
        (400, 300),                     # l2
        (300, 1),                       # l3
        (state_dim + latent_dim, 400),  # l4
        (400, 300),                     # l5
        (300, 1),                       # l6
    ]
    params = {}
    for idx, (fan_in, fan_out) in enumerate(dims, start=1):
        key, kw, kb = jax.random.split(key, 3)
        bound = 1.0 / jnp.sqrt(float(fan_in))
        params[f"w{idx}"] = jax.random.uniform(
            kw, (fan_in, fan_out), jnp.float32, minval=-bound, maxval=bound)
        params[f"b{idx}"] = jax.random.uniform(
            kb, (1, fan_out), jnp.float32, minval=-bound, maxval=bound)
    return params


def reference_forward(state, z, params):
    x = jnp.concatenate([state, z], axis=1)
    h1 = jnp.maximum(x @ params["w1"] + params["b1"], 0.0)
    h1 = jnp.maximum(h1 @ params["w2"] + params["b2"], 0.0)
    q1 = h1 @ params["w3"] + params["b3"]
    h2 = jnp.maximum(x @ params["w4"] + params["b4"], 0.0)
    h2 = jnp.maximum(h2 @ params["w5"] + params["b5"], 0.0)
    q2 = h2 @ params["w6"] + params["b6"]
    return q1, q2


def _quantize_weights(params, dtype):
    """Round weights through `dtype` (matching the kernel's weight storage)."""
    return {k: (v.astype(dtype).astype(jnp.float32) if k.startswith("w") else v)
            for k, v in params.items()}


if __name__ == "__main__":
    STATE_DIM = 11
    LATENT_DIM = 6   # latent_dim of the BCQ VAE

    key = jax.random.PRNGKey(0)
    k_params, k_s1, k_z1, k_s2, k_z2 = jax.random.split(key, 5)
    params = init_params(k_params, STATE_DIM, LATENT_DIM)

    # ---------- small batch (single grid step) ----------
    B = 8
    state = jax.random.normal(k_s1, (B, STATE_DIM), jnp.float32)
    # Matches the `z is None` branch of the module: randn clamped to [-0.5, 0.5].
    z = jnp.clip(jax.random.normal(k_z1, (B, LATENT_DIM), jnp.float32), -0.5, 0.5)

    # f32 weight storage: compare against exact-weight reference.
    packed_f32 = pack_params(params, STATE_DIM, LATENT_DIM, weights_dtype=jnp.float32)
    q1, q2 = decoder_critic_forward(state, z, packed_f32)
    q1 = jax.block_until_ready(q1)
    q2 = jax.block_until_ready(q2)
    q1_ref, q2_ref = reference_forward(state, z, params)
    assert q1.shape == (B, 1) and q2.shape == (B, 1)
    assert jnp.allclose(q1, q1_ref, atol=1e-4, rtol=1e-4)
    assert jnp.allclose(q2, q2_ref, atol=1e-4, rtol=1e-4)

    # bf16 weight storage (default): compare against a reference using the SAME
    # bf16-rounded weights (activations stay f32 in both), so tolerance stays tight.
    packed_bf16 = pack_params(params, STATE_DIM, LATENT_DIM)  # bf16 default
    q1b, q2b = decoder_critic_forward(state, z, packed_bf16)
    q1b = jax.block_until_ready(q1b)
    q2b = jax.block_until_ready(q2b)
    params_q = _quantize_weights(params, jnp.bfloat16)
    q1_qref, q2_qref = reference_forward(state, z, params_q)
    assert jnp.allclose(q1b, q1_qref, atol=1e-4, rtol=1e-4)
    assert jnp.allclose(q2b, q2_qref, atol=1e-4, rtol=1e-4)

    # ---------- larger batch: exercises TB=256 tiles, batch padding, 2 grid steps ----------
    B2 = 300
    state2 = jax.random.normal(k_s2, (B2, STATE_DIM), jnp.float32)
    z2 = jnp.clip(jax.random.normal(k_z2, (B2, LATENT_DIM), jnp.float32), -0.5, 0.5)
    q1L, q2L = decoder_critic_forward(state2, z2, packed_bf16)
    q1L = jax.block_until_ready(q1L)
    q2L = jax.block_until_ready(q2L)
    q1L_ref, q2L_ref = reference_forward(state2, z2, params_q)
    assert q1L.shape == (B2, 1) and q2L.shape == (B2, 1)
    assert jnp.allclose(q1L, q1L_ref, atol=1e-4, rtol=1e-4)
    assert jnp.allclose(q2L, q2L_ref, atol=1e-4, rtol=1e-4)

    print("KERNEL_OK")
</pallas_src>

<mosaic_0001>
module attributes {stable_mosaic.version = 11 : i64} {
  func.func @decoder_critic_kernel(%arg0: i32, %arg1: memref<8x128xf32, #tpu.memory_space<vmem>>, %arg2: memref<128x1024xf32, #tpu.memory_space<vmem>>, %arg3: memref<1x1024xf32, #tpu.memory_space<vmem>>, %arg4: memref<2x400x300xf32, #tpu.memory_space<vmem>>, %arg5: memref<2x1x300xf32, #tpu.memory_space<vmem>>, %arg6: memref<2x1x300xf32, #tpu.memory_space<vmem>>, %arg7: memref<1x2xf32, #tpu.memory_space<vmem>>, %arg8: memref<8x2xf32, #tpu.memory_space<vmem>>) attributes {dimension_semantics = [#tpu.dimension_semantics<parallel>], iteration_bounds = array<i64: 1>, scalar_prefetch = 0 : i64, scratch_operands = 0 : i64, tpu.core_type = #tpu.core_type<tc>, window_params = [{transform_indices = @transform_0, window_bounds = array<i64: 8, 128>}, {pipeline_mode = #tpu.pipeline_mode<synchronous>, transform_indices = @transform_1, window_bounds = array<i64: 128, 1024>}, {pipeline_mode = #tpu.pipeline_mode<synchronous>, transform_indices = @transform_2, window_bounds = array<i64: 1, 1024>}, {pipeline_mode = #tpu.pipeline_mode<synchronous>, transform_indices = @transform_3, window_bounds = array<i64: 2, 400, 300>}, {pipeline_mode = #tpu.pipeline_mode<synchronous>, transform_indices = @transform_4, window_bounds = array<i64: 2, 1, 300>}, {pipeline_mode = #tpu.pipeline_mode<synchronous>, transform_indices = @transform_5, window_bounds = array<i64: 2, 1, 300>}, {pipeline_mode = #tpu.pipeline_mode<synchronous>, transform_indices = @transform_6, window_bounds = array<i64: 1, 2>}, {transform_indices = @transform_7, window_bounds = array<i64: 8, 2>}]} {
    %c0 = arith.constant 0 : index
    %c0_0 = arith.constant 0 : index
    %0 = vector.load %arg1[%c0, %c0_0] : memref<8x128xf32, #tpu.memory_space<vmem>>, vector<8x128xf32>
    %c0_1 = arith.constant 0 : index
    %c0_2 = arith.constant 0 : index
    %1 = vector.load %arg2[%c0_1, %c0_2] : memref<128x1024xf32, #tpu.memory_space<vmem>>, vector<128x1024xf32>
    %cst = arith.constant dense<0.000000e+00> : vector<8x1024xf32>
    %2 = tpu.matmul %0, %1, %cst {dimension_numbers = #tpu.dot_dimension_numbers<[1], [0], [0], [1], [0, 0, 1, 1], [], []>} : vector<8x128xf32>, vector<128x1024xf32>, vector<8x1024xf32> -> vector<8x1024xf32>
    %c0_3 = arith.constant 0 : index
    %c0_4 = arith.constant 0 : index
    %3 = vector.load %arg3[%c0_3, %c0_4] : memref<1x1024xf32, #tpu.memory_space<vmem>>, vector<1x1024xf32>
    %4 = vector.broadcast %3 : vector<1x1024xf32> to vector<8x1024xf32>
    %5 = arith.addf %2, %4 : vector<8x1024xf32>
    %cst_5 = arith.constant 0.000000e+00 : f32
    %6 = vector.broadcast %cst_5 : f32 to vector<8x1024xf32>
    %7 = arith.maximumf %5, %6 : vector<8x1024xf32>
    %8 = vector.extract_strided_slice %7 {offsets = [0, 0], sizes = [8, 400], strides = [1, 1]} : vector<8x1024xf32> to vector<8x400xf32>
    %9 = vector.extract_strided_slice %7 {offsets = [0, 512], sizes = [8, 400], strides = [1, 1]} : vector<8x1024xf32> to vector<8x400xf32>
    %c0_6 = arith.constant 0 : index
    %c0_7 = arith.constant 0 : index
    %c0_8 = arith.constant 0 : index
    %10 = vector.load %arg4[%c0_6, %c0_7, %c0_8] : memref<2x400x300xf32, #tpu.memory_space<vmem>>, vector<1x400x300xf32>
    %11 = vector.shape_cast %10 : vector<1x400x300xf32> to vector<400x300xf32>
    %cst_9 = arith.constant dense<0.000000e+00> : vector<8x300xf32>
    %12 = tpu.matmul %8, %11, %cst_9 {dimension_numbers = #tpu.dot_dimension_numbers<[1], [0], [0], [1], [0, 0, 1, 1], [], []>} : vector<8x400xf32>, vector<400x300xf32>, vector<8x300xf32> -> vector<8x300xf32>
    %c0_10 = arith.constant 0 : index
    %c0_11 = arith.constant 0 : index
    %c0_12 = arith.constant 0 : index
    %13 = vector.load %arg5[%c0_10, %c0_11, %c0_12] : memref<2x1x300xf32, #tpu.memory_space<vmem>>, vector<1x1x300xf32>
    %14 = vector.shape_cast %13 : vector<1x1x300xf32> to vector<1x300xf32>
    %15 = vector.broadcast %14 : vector<1x300xf32> to vector<8x300xf32>
    %16 = arith.addf %12, %15 : vector<8x300xf32>
    %cst_13 = arith.constant 0.000000e+00 : f32
    %17 = vector.broadcast %cst_13 : f32 to vector<8x300xf32>
    %18 = arith.maximumf %16, %17 : vector<8x300xf32>
    %c1 = arith.constant 1 : index
    %c0_14 = arith.constant 0 : index
    %c0_15 = arith.constant 0 : index
    %19 = vector.load %arg4[%c1, %c0_14, %c0_15] : memref<2x400x300xf32, #tpu.memory_space<vmem>>, vector<1x400x300xf32>
    %20 = vector.shape_cast %19 : vector<1x400x300xf32> to vector<400x300xf32>
    %cst_16 = arith.constant dense<0.000000e+00> : vector<8x300xf32>
    %21 = tpu.matmul %9, %20, %cst_16 {dimension_numbers = #tpu.dot_dimension_numbers<[1], [0], [0], [1], [0, 0, 1, 1], [], []>} : vector<8x400xf32>, vector<400x300xf32>, vector<8x300xf32> -> vector<8x300xf32>
    %c1_17 = arith.constant 1 : index
    %c0_18 = arith.constant 0 : index
    %c0_19 = arith.constant 0 : index
    %22 = vector.load %arg5[%c1_17, %c0_18, %c0_19] : memref<2x1x300xf32, #tpu.memory_space<vmem>>, vector<1x1x300xf32>
    %23 = vector.shape_cast %22 : vector<1x1x300xf32> to vector<1x300xf32>
    %24 = vector.broadcast %23 : vector<1x300xf32> to vector<8x300xf32>
    %25 = arith.addf %21, %24 : vector<8x300xf32>
    %cst_20 = arith.constant 0.000000e+00 : f32
    %26 = vector.broadcast %cst_20 : f32 to vector<8x300xf32>
    %27 = arith.maximumf %25, %26 : vector<8x300xf32>
    %c0_21 = arith.constant 0 : index
    %c0_22 = arith.constant 0 : index
    %c0_23 = arith.constant 0 : index
    %28 = vector.load %arg6[%c0_21, %c0_22, %c0_23] : memref<2x1x300xf32, #tpu.memory_space<vmem>>, vector<1x1x300xf32>
    %29 = vector.shape_cast %28 : vector<1x1x300xf32> to vector<1x300xf32>
    %30 = vector.broadcast %29 : vector<1x300xf32> to vector<8x300xf32>
    %31 = arith.mulf %18, %30 : vector<8x300xf32>
    %cst_24 = arith.constant dense<0.000000e+00> : vector<8xf32>
    %32 = vector.multi_reduction <add>, %31, %cst_24 [1] : vector<8x300xf32> to vector<8xf32>
    %33 = vector.shape_cast %32 : vector<8xf32> to vector<8x1xf32>
    %c1_25 = arith.constant 1 : index
    %c0_26 = arith.constant 0 : index
    %c0_27 = arith.constant 0 : index
    %34 = vector.load %arg6[%c1_25, %c0_26, %c0_27] : memref<2x1x300xf32, #tpu.memory_space<vmem>>, vector<1x1x300xf32>
    %35 = vector.shape_cast %34 : vector<1x1x300xf32> to vector<1x300xf32>
    %36 = vector.broadcast %35 : vector<1x300xf32> to vector<8x300xf32>
    %37 = arith.mulf %27, %36 : vector<8x300xf32>
    %cst_28 = arith.constant dense<0.000000e+00> : vector<8xf32>
    %38 = vector.multi_reduction <add>, %37, %cst_28 [1] : vector<8x300xf32> to vector<8xf32>
    %39 = vector.shape_cast %38 : vector<8xf32> to vector<8x1xf32>
    %40 = tpu.concatenate %33, %39 in 1 : vector<8x1xf32>, vector<8x1xf32> -> vector<8x2xf32>
    %c0_29 = arith.constant 0 : index
    %c0_30 = arith.constant 0 : index
    %41 = vector.load %arg7[%c0_29, %c0_30] : memref<1x2xf32, #tpu.memory_space<vmem>>, vector<1x2xf32>
    %42 = vector.broadcast %41 : vector<1x2xf32> to vector<8x2xf32>
    %43 = arith.addf %40, %42 : vector<8x2xf32>
    %c0_31 = arith.constant 0 : index
    %c0_32 = arith.constant 0 : index
    %44 = vector.load %arg8[%c0_31, %c0_32] : memref<8x2xf32, #tpu.memory_space<vmem>>, vector<8x2xf32>
    tpu.vector_store %arg8[%c0_31, %c0_32], %43 {strides = array<i32>} : memref<8x2xf32, #tpu.memory_space<vmem>>, vector<8x2xf32>,
    return
  }
  func.func @transform_0(%arg0: i32) -> (i32, i32) {
    %c0_i32 = arith.constant 0 : i32
    %c0_i32_0 = arith.constant 0 : i32
    return %arg0, %c0_i32 : i32, i32
  }
  func.func @transform_1(%arg0: i32) -> (i32, i32) {
    %c0_i32 = arith.constant 0 : i32
    %c0_i32_0 = arith.constant 0 : i32
    %c0_i32_1 = arith.constant 0 : i32
    return %c0_i32, %c0_i32_0 : i32, i32
  }
  func.func @transform_2(%arg0: i32) -> (i32, i32) {
    %c0_i32 = arith.constant 0 : i32
    %c0_i32_0 = arith.constant 0 : i32
    %c0_i32_1 = arith.constant 0 : i32
    return %c0_i32, %c0_i32_0 : i32, i32
  }
  func.func @transform_3(%arg0: i32) -> (i32, i32, i32) {
    %c0_i32 = arith.constant 0 : i32
    %c0_i32_0 = arith.constant 0 : i32
    %c0_i32_1 = arith.constant 0 : i32
    %c0_i32_2 = arith.constant 0 : i32
    return %c0_i32, %c0_i32_0, %c0_i32_1 : i32, i32, i32
  }
  func.func @transform_4(%arg0: i32) -> (i32, i32, i32) {
    %c0_i32 = arith.constant 0 : i32
    %c0_i32_0 = arith.constant 0 : i32
    %c0_i32_1 = arith.constant 0 : i32
    %c0_i32_2 = arith.constant 0 : i32
    return %c0_i32, %c0_i32_0, %c0_i32_1 : i32, i32, i32
  }
  func.func @transform_5(%arg0: i32) -> (i32, i32, i32) {
    %c0_i32 = arith.constant 0 : i32
    %c0_i32_0 = arith.constant 0 : i32
    %c0_i32_1 = arith.constant 0 : i32
    %c0_i32_2 = arith.constant 0 : i32
    return %c0_i32, %c0_i32_0, %c0_i32_1 : i32, i32, i32
  }
  func.func @transform_6(%arg0: i32) -> (i32, i32) {
    %c0_i32 = arith.constant 0 : i32
    %c0_i32_0 = arith.constant 0 : i32
    %c0_i32_1 = arith.constant 0 : i32
    return %c0_i32, %c0_i32_0 : i32, i32
  }
  func.func @transform_7(%arg0: i32) -> (i32, i32) {
    %c0_i32 = arith.constant 0 : i32
    %c0_i32_0 = arith.constant 0 : i32
    return %arg0, %c0_i32 : i32, i32
  }
}

</mosaic_0001>

<llo_original>
// kernel: tpu_custom_call.1
$region0: #{tpu_custom_call.1}
  #allocation0 [shape = 'u32[]', space=smem, size = 0x4, offset = 0x4, fixed_abs, tag = 'smem constant byte address 0x4 - core index']
  #allocation1 [shape = 'u32[144,128]{1,0:T(1,128)}', space=vmem, size = 0x12000, scoped, tag = 'internal scratch']
  %s0 = inlined_call_operand.hbm [shape: f32[8,128], index: 0, kind: input, shape index: {}]
  %s1 = inlined_call_operand.hbm [shape: f32[128,1024], index: 1, kind: input, shape index: {}]
  %s2 = inlined_call_operand.hbm [shape: f32[1,1024], index: 2, kind: input, shape index: {}]
  %s3 = inlined_call_operand.hbm [shape: f32[2,400,300], index: 3, kind: input, shape index: {}]
  %s4 = inlined_call_operand.hbm [shape: f32[2,1,300], index: 4, kind: input, shape index: {}]
  %s5 = inlined_call_operand.hbm [shape: f32[2,1,300], index: 5, kind: input, shape index: {}]
  %s6 = inlined_call_operand.hbm [shape: f32[1,2], index: 6, kind: input, shape index: {}]
  %s7 = inlined_call_operand.vmem [shape: f32[8,2], index: 7, kind: output, shape index: {}]
  %s8 = sld [smem:[#allocation0]]
  $region66: #{tpu_custom_call.1} parent=0
    _
  %s10 = ssub.s32 1, %s8
  %s11 = scalar_select 0, %s10, %s8
  $region1: #{tpu_custom_call.1} parent=0
    #allocation2 [shape = 'u8[4096]{0}', space=vmem, size = 0x1000, scoped, tag = 'input window, operand 0, single buffered']
    #allocation3 [shape = 's32[1]{0}', space=sflag, size = 0x4, scoped, tag = 'scoped memory for tpu_custom_call.1']
    #allocation4 [shape = 'u8[524288]{0}', space=vmem, size = 0x80000, scoped, tag = 'input window, operand 1, single buffered']
    #allocation5 [shape = 's32[1]{0}', space=sflag, size = 0x4, scoped, tag = 'scoped memory for tpu_custom_call.1']
    #allocation6 [shape = 'u8[4096]{0}', space=vmem, size = 0x1000, scoped, tag = 'input window, operand 2, single buffered']
    #allocation7 [shape = 'u8[1228800]{0}', space=vmem, size = 0x12c000, scoped, tag = 'input window, operand 3, single buffered']
    #allocation8 [shape = 's32[1]{0}', space=sflag, size = 0x4, scoped, tag = 'scoped memory for tpu_custom_call.1']
    #allocation9 [shape = 'u8[3072]{0}', space=vmem, size = 0xc00, scoped, tag = 'input window, operand 4, single buffered']
    #allocation10 [shape = 'u8[3072]{0}', space=vmem, size = 0xc00, scoped, tag = 'input window, operand 5, single buffered']
    #allocation11 [shape = 's32[1]{0}', space=sflag, size = 0x4, scoped, tag = 'scoped memory for tpu_custom_call.1']
    #allocation12 [shape = 'u8[512]{0}', space=vmem, size = 0x400, scoped, tag = 'input window, operand 6, single buffered']
    %12 = vsyncpa [#allocation3], 0
    %13 = vsyncpa [#allocation5], 0
    %14 = vsyncpa [#allocation8], 0
    %15 = vsyncpa [#allocation11], 0
    // Predicated region
    $region2: #{tpu_custom_call.1} parent=1 // pred_check
      _
    $region3: #{tpu_custom_call.1} parent=1 // pred_check_branch
      %17 = sbr.rel (0) target = $region5
    $region4: #{tpu_custom_call.1} parent=1 // pred_region
      %s19 = ssub.s32 128, 128
      %20 = vsyncadd [#allocation3], %s19
      %s22 = sshll.u32 [#allocation2], 4
      %s23 = int_to_ptr.vmem [resolvable:$true] %s22
      %25 = dma.hbm_to_vmem [thread:$0]  %s0, 128, %s23, [#allocation3]
    $region5: #{tpu_custom_call.1} parent=1 // pred_fallthru
      _
    // Predicated region
    $region6: #{tpu_custom_call.1} parent=1 // pred_check
      _
    $region7: #{tpu_custom_call.1} parent=1 // pred_check_branch
      %27 = sbr.rel (0) target = $region9
    $region8: #{tpu_custom_call.1} parent=1 // pred_region
      %s29 = ssub.s32 16384, 16384
      %30 = vsyncadd [#allocation5], %s29
      %s31 = sshll.u32 [#allocation4], 4
      %s32 = int_to_ptr.vmem [resolvable:$true] %s31
      %37 = dma.hbm_to_vmem [thread:$0]  %s1, 16384, %s32, [#allocation5], 1024, 1024, 64
    $region9: #{tpu_custom_call.1} parent=1 // pred_fallthru
      _
    // Predicated region
    $region10: #{tpu_custom_call.1} parent=1 // pred_check
      _
    $region11: #{tpu_custom_call.1} parent=1 // pred_check_branch
      %39 = sbr.rel (0) target = $region13
    $region12: #{tpu_custom_call.1} parent=1 // pred_region
      %s41 = ssub.s32 128, 128
      %42 = vsyncadd [#allocation5], %s41
      %s44 = sshll.u32 [#allocation6], 4
      %s45 = int_to_ptr.vmem [resolvable:$true] %s44
      %47 = dma.hbm_to_vmem [thread:$0]  %s2, 128, %s45, [#allocation5]
    $region13: #{tpu_custom_call.1} parent=1 // pred_fallthru
      _
    // Predicated region
    $region14: #{tpu_custom_call.1} parent=1 // pred_check
      _
    $region15: #{tpu_custom_call.1} parent=1 // pred_check_branch
      %49 = sbr.rel (0) target = $region17
    $region16: #{tpu_custom_call.1} parent=1 // pred_region
      %s51 = ssub.s32 38400, 38400
      %52 = vsyncadd [#allocation8], %s51
      %s53 = sshll.u32 [#allocation7], 4
      %s54 = int_to_ptr.vmem [resolvable:$true] %s53
      %59 = dma.hbm_to_vmem [thread:$0]  %s3, 38400, %s54, [#allocation8], 384, 384, 24
    $region17: #{tpu_custom_call.1} parent=1 // pred_fallthru
      _
    // Predicated region
    $region18: #{tpu_custom_call.1} parent=1 // pred_check
      _
    $region19: #{tpu_custom_call.1} parent=1 // pred_check_branch
      %61 = sbr.rel (0) target = $region21
    $region20: #{tpu_custom_call.1} parent=1 // pred_region
      %s63 = ssub.s32 96, 96
      %64 = vsyncadd [#allocation8], %s63
      %s65 = sshll.u32 [#allocation9], 4
      %s66 = int_to_ptr.vmem [resolvable:$true] %s65
      %71 = dma.hbm_to_vmem [thread:$0]  %s4, 96, %s66, [#allocation8], 48, 48, 3
    $region21: #{tpu_custom_call.1} parent=1 // pred_fallthru
      _
    // Predicated region
    $region22: #{tpu_custom_call.1} parent=1 // pred_check
      _
    $region23: #{tpu_custom_call.1} parent=1 // pred_check_branch
      %73 = sbr.rel (0) target = $region25
    $region24: #{tpu_custom_call.1} parent=1 // pred_region
      %s75 = ssub.s32 96, 96
      %76 = vsyncadd [#allocation11], %s75
      %s77 = sshll.u32 [#allocation10], 4
      %s78 = int_to_ptr.vmem [resolvable:$true] %s77
      %83 = dma.hbm_to_vmem [thread:$0]  %s5, 96, %s78, [#allocation11], 48, 48, 3
    $region25: #{tpu_custom_call.1} parent=1 // pred_fallthru
      _
    // Predicated region
    $region26: #{tpu_custom_call.1} parent=1 // pred_check
      _
    $region27: #{tpu_custom_call.1} parent=1 // pred_check_branch
      %85 = sbr.rel (0) target = $region29
    $region28: #{tpu_custom_call.1} parent=1 // pred_region
      %s87 = ssub.s32 16, 16
      %88 = vsyncadd [#allocation11], %s87
      %s90 = sshll.u32 [#allocation12], 4
      %s91 = int_to_ptr.vmem [resolvable:$true] %s90
      %93 = dma.hbm_to_vmem [thread:$0]  %s6, 16, %s91, [#allocation11]
    $region29: #{tpu_custom_call.1} parent=1 // pred_fallthru
      _
    // Predicated region
    $region30: #{tpu_custom_call.1} parent=1 // pred_check
      _
    $region31: #{tpu_custom_call.1} parent=1 // pred_check_branch
      %95 = sbr.rel (0) target = $region33
    $region32: #{tpu_custom_call.1} parent=1 // pred_region
      %96 = dma.done [#allocation3], 128
    $region33: #{tpu_custom_call.1} parent=1 // pred_fallthru
      _
    // Predicated region
    $region34: #{tpu_custom_call.1} parent=1 // pred_check
      _
    $region35: #{tpu_custom_call.1} parent=1 // pred_check_branch
      %98 = sbr.rel (0) target = $region37
    $region36: #{tpu_custom_call.1} parent=1 // pred_region
      %99 = dma.done [#allocation5], 16384
    $region37: #{tpu_custom_call.1} parent=1 // pred_fallthru
      _
    // Predicated region
    $region38: #{tpu_custom_call.1} parent=1 // pred_check
      _
    $region39: #{tpu_custom_call.1} parent=1 // pred_check_branch
      %101 = sbr.rel (0) target = $region41
    $region40: #{tpu_custom_call.1} parent=1 // pred_region
      %102 = dma.done [#allocation5], 128
    $region41: #{tpu_custom_call.1} parent=1 // pred_fallthru
      _
    // Predicated region
    $region42: #{tpu_custom_call.1} parent=1 // pred_check
      _
    $region43: #{tpu_custom_call.1} parent=1 // pred_check_branch
      %104 = sbr.rel (0) target = $region45
    $region44: #{tpu_custom_call.1} parent=1 // pred_region
      %105 = dma.done [#allocation8], 38400
    $region45: #{tpu_custom_call.1} parent=1 // pred_fallthru
      _
    // Predicated region
    $region46: #{tpu_custom_call.1} parent=1 // pred_check
      _
    $region47: #{tpu_custom_call.1} parent=1 // pred_check_branch
      %107 = sbr.rel (0) target = $region49
    $region48: #{tpu_custom_call.1} parent=1 // pred_region
      %108 = dma.done [#allocation8], 96
    $region49: #{tpu_custom_call.1} parent=1 // pred_fallthru
      _
    // Predicated region
    $region50: #{tpu_custom_call.1} parent=1 // pred_check
      _
    $region51: #{tpu_custom_call.1} parent=1 // pred_check_branch
      %110 = sbr.rel (0) target = $region53
    $region52: #{tpu_custom_call.1} parent=1 // pred_region
      %111 = dma.done [#allocation11], 96
    $region53: #{tpu_custom_call.1} parent=1 // pred_fallthru
      _
    // Predicated region
    $region54: #{tpu_custom_call.1} parent=1 // pred_check
      _
    $region55: #{tpu_custom_call.1} parent=1 // pred_check_branch
      %113 = sbr.rel (0) target = $region57
    $region56: #{tpu_custom_call.1} parent=1 // pred_region
      %114 = dma.done [#allocation11], 16
    $region57: #{tpu_custom_call.1} parent=1 // pred_fallthru
      _
    %v115 = vld [vmem:[#allocation2] sm:$0xff]
    %v116 = vld [vmem:[#allocation4] sm:$0xff]
    %v117 = vld [vmem:[#allocation4 + $0x8] sm:$0xff]
    %v118 = vld [vmem:[#allocation4 + $0x10] sm:$0xff]
    %v119 = vld [vmem:[#allocation4 + $0x18] sm:$0xff]
    %v120 = vld [vmem:[#allocation4 + $0x20] sm:$0xff]
    %v121 = vld [vmem:[#allocation4 + $0x28] sm:$0xff]
    %v122 = vld [vmem:[#allocation4 + $0x30] sm:$0xff]
    %v123 = vld [vmem:[#allocation4 + $0x38] sm:$0xff]
    %v124 = vld [vmem:[#allocation4 + $0x40] sm:$0xff]
    %v125 = vld [vmem:[#allocation4 + $0x48] sm:$0xff]
    %v126 = vld [vmem:[#allocation4 + $0x50] sm:$0xff]
    %v127 = vld [vmem:[#allocation4 + $0x58] sm:$0xff]
    %v128 = vld [vmem:[#allocation4 + $0x60] sm:$0xff]
    %v129 = vld [vmem:[#allocation4 + $0x68] sm:$0xff]
    %v130 = vld [vmem:[#allocation4 + $0x70] sm:$0xff]
    %v131 = vld [vmem:[#allocation4 + $0x78] sm:$0xff]
    %v132 = vld [vmem:[#allocation4 + $0x80] sm:$0xff]
    %v133 = vld [vmem:[#allocation4 + $0x88] sm:$0xff]
    %v134 = vld [vmem:[#allocation4 + $0x90] sm:$0xff]
    %v135 = vld [vmem:[#allocation4 + $0x98] sm:$0xff]
    %v136 = vld [vmem:[#allocation4 + $0xa0] sm:$0xff]
    %v137 = vld [vmem:[#allocation4 + $0xa8] sm:$0xff]
    %v138 = vld [vmem:[#allocation4 + $0xb0] sm:$0xff]
    %v139 = vld [vmem:[#allocation4 + $0xb8] sm:$0xff]
    %v140 = vld [vmem:[#allocation4 + $0xc0] sm:$0xff]
    %v141 = vld [vmem:[#allocation4 + $0xc8] sm:$0xff]
    %v142 = vld [vmem:[#allocation4 + $0xd0] sm:$0xff]
    %v143 = vld [vmem:[#allocation4 + $0xd8] sm:$0xff]
    %v144 = vld [vmem:[#allocation4 + $0xe0] sm:$0xff]
    %v145 = vld [vmem:[#allocation4 + $0xe8] sm:$0xff]
    %v146 = vld [vmem:[#allocation4 + $0xf0] sm:$0xff]
    %v147 = vld [vmem:[#allocation4 + $0xf8] sm:$0xff]
    %v148 = vld [vmem:[#allocation4 + $0x100] sm:$0xff]
    %v149 = vld [vmem:[#allocation4 + $0x108] sm:$0xff]
    %v150 = vld [vmem:[#allocation4 + $0x110] sm:$0xff]
    %v151 = vld [vmem:[#allocation4 + $0x118] sm:$0xff]
    %v152 = vld [vmem:[#allocation4 + $0x120] sm:$0xff]
    %v153 = vld [vmem:[#allocation4 + $0x128] sm:$0xff]
    %v154 = vld [vmem:[#allocation4 + $0x130] sm:$0xff]
    %v155 = vld [vmem:[#allocation4 + $0x138] sm:$0xff]
    %v156 = vld [vmem:[#allocation4 + $0x140] sm:$0xff]
    %v157 = vld [vmem:[#allocation4 + $0x148] sm:$0xff]
    %v158 = vld [vmem:[#allocation4 + $0x150] sm:$0xff]
    %v159 = vld [vmem:[#allocation4 + $0x158] sm:$0xff]
    %v160 = vld [vmem:[#allocation4 + $0x160] sm:$0xff]
    %v161 = vld [vmem:[#allocation4 + $0x168] sm:$0xff]
    %v162 = vld [vmem:[#allocation4 + $0x170] sm:$0xff]
    %v163 = vld [vmem:[#allocation4 + $0x178] sm:$0xff]
    %v164 = vld [vmem:[#allocation4 + $0x180] sm:$0xff]
    %v165 = vld [vmem:[#allocation4 + $0x188] sm:$0xff]
    %v166 = vld [vmem:[#allocation4 + $0x190] sm:$0xff]
    %v167 = vld [vmem:[#allocation4 + $0x198] sm:$0xff]
    %v168 = vld [vmem:[#allocation4 + $0x1a0] sm:$0xff]
    %v169 = vld [vmem:[#allocation4 + $0x1a8] sm:$0xff]
    %v170 = vld [vmem:[#allocation4 + $0x1b0] sm:$0xff]
    %v171 = vld [vmem:[#allocation4 + $0x1b8] sm:$0xff]
    %v172 = vld [vmem:[#allocation4 + $0x1c0] sm:$0xff]
    %v173 = vld [vmem:[#allocation4 + $0x1c8] sm:$0xff]
    %v174 = vld [vmem:[#allocation4 + $0x1d0] sm:$0xff]
    %v175 = vld [vmem:[#allocation4 + $0x1d8] sm:$0xff]
    %v176 = vld [vmem:[#allocation4 + $0x1e0] sm:$0xff]
    %v177 = vld [vmem:[#allocation4 + $0x1e8] sm:$0xff]
    %v178 = vld [vmem:[#allocation4 + $0x1f0] sm:$0xff]
    %v179 = vld [vmem:[#allocation4 + $0x1f8] sm:$0xff]
    %v180 = vld [vmem:[#allocation4 + $0x200] sm:$0xff]
    %v181 = vld [vmem:[#allocation4 + $0x208] sm:$0xff]
    %v182 = vld [vmem:[#allocation4 + $0x210] sm:$0xff]
    %v183 = vld [vmem:[#allocation4 + $0x218] sm:$0xff]
    %v184 = vld [vmem:[#allocation4 + $0x220] sm:$0xff]
    %v185 = vld [vmem:[#allocation4 + $0x228] sm:$0xff]
    %v186 = vld [vmem:[#allocation4 + $0x230] sm:$0xff]
    %v187 = vld [vmem:[#allocation4 + $0x238] sm:$0xff]
    %v188 = vld [vmem:[#allocation4 + $0x240] sm:$0xff]
    %v189 = vld [vmem:[#allocation4 + $0x248] sm:$0xff]
    %v190 = vld [vmem:[#allocation4 + $0x250] sm:$0xff]
    %v191 = vld [vmem:[#allocation4 + $0x258] sm:$0xff]
    %v192 = vld [vmem:[#allocation4 + $0x260] sm:$0xff]
    %v193 = vld [vmem:[#allocation4 + $0x268] sm:$0xff]
    %v194 = vld [vmem:[#allocation4 + $0x270] sm:$0xff]
    %v195 = vld [vmem:[#allocation4 + $0x278] sm:$0xff]
    %v196 = vld [vmem:[#allocation4 + $0x280] sm:$0xff]
    %v197 = vld [vmem:[#allocation4 + $0x288] sm:$0xff]
    %v198 = vld [vmem:[#allocation4 + $0x290] sm:$0xff]
    %v199 = vld [vmem:[#allocation4 + $0x298] sm:$0xff]
    %v200 = vld [vmem:[#allocation4 + $0x2a0] sm:$0xff]
    %v201 = vld [vmem:[#allocation4 + $0x2a8] sm:$0xff]
    %v202 = vld [vmem:[#allocation4 + $0x2b0] sm:$0xff]
    %v203 = vld [vmem:[#allocation4 + $0x2b8] sm:$0xff]
    %v204 = vld [vmem:[#allocation4 + $0x2c0] sm:$0xff]
    %v205 = vld [vmem:[#allocation4 + $0x2c8] sm:$0xff]
    %v206 = vld [vmem:[#allocation4 + $0x2d0] sm:$0xff]
    %v207 = vld [vmem:[#allocation4 + $0x2d8] sm:$0xff]
    %v208 = vld [vmem:[#allocation4 + $0x2e0] sm:$0xff]
    %v209 = vld [vmem:[#allocation4 + $0x2e8] sm:$0xff]
    %v210 = vld [vmem:[#allocation4 + $0x2f0] sm:$0xff]
    %v211 = vld [vmem:[#allocation4 + $0x2f8] sm:$0xff]
    %v212 = vld [vmem:[#allocation4 + $0x300] sm:$0xff]
    %v213 = vld [vmem:[#allocation4 + $0x308] sm:$0xff]
    %v214 = vld [vmem:[#allocation4 + $0x310] sm:$0xff]
    %v215 = vld [vmem:[#allocation4 + $0x318] sm:$0xff]
    %v216 = vld [vmem:[#allocation4 + $0x320] sm:$0xff]
    %v217 = vld [vmem:[#allocation4 + $0x328] sm:$0xff]
    %v218 = vld [vmem:[#allocation4 + $0x330] sm:$0xff]
    %v219 = vld [vmem:[#allocation4 + $0x338] sm:$0xff]
    %v220 = vld [vmem:[#allocation4 + $0x340] sm:$0xff]
    %v221 = vld [vmem:[#allocation4 + $0x348] sm:$0xff]
    %v222 = vld [vmem:[#allocation4 + $0x350] sm:$0xff]
    %v223 = vld [vmem:[#allocation4 + $0x358] sm:$0xff]
    %v224 = vld [vmem:[#allocation4 + $0x360] sm:$0xff]
    %v225 = vld [vmem:[#allocation4 + $0x368] sm:$0xff]
    %v226 = vld [vmem:[#allocation4 + $0x370] sm:$0xff]
    %v227 = vld [vmem:[#allocation4 + $0x378] sm:$0xff]
    %v228 = vld [vmem:[#allocation4 + $0x380] sm:$0xff]
    %v229 = vld [vmem:[#allocation4 + $0x388] sm:$0xff]
    %v230 = vld [vmem:[#allocation4 + $0x390] sm:$0xff]
    %v231 = vld [vmem:[#allocation4 + $0x398] sm:$0xff]
    %v232 = vld [vmem:[#allocation4 + $0x3a0] sm:$0xff]
    %v233 = vld [vmem:[#allocation4 + $0x3a8] sm:$0xff]
    %v234 = vld [vmem:[#allocation4 + $0x3b0] sm:$0xff]
    %v235 = vld [vmem:[#allocation4 + $0x3b8] sm:$0xff]
    %v236 = vld [vmem:[#allocation4 + $0x3c0] sm:$0xff]
    %v237 = vld [vmem:[#allocation4 + $0x3c8] sm:$0xff]
    %v238 = vld [vmem:[#allocation4 + $0x3d0] sm:$0xff]
    %v239 = vld [vmem:[#allocation4 + $0x3d8] sm:$0xff]
    %v240 = vld [vmem:[#allocation4 + $0x3e0] sm:$0xff]
    %v241 = vld [vmem:[#allocation4 + $0x3e8] sm:$0xff]
    %v242 = vld [vmem:[#allocation4 + $0x3f0] sm:$0xff]
    %v243 = vld [vmem:[#allocation4 + $0x3f8] sm:$0xff]
    %v244 = vld [vmem:[#allocation6] sm:$0xff]
    %v246 = vlaneseq
    %v247 = vshrl.u32 %v246, 7
    %v248 = vsub.s32 0, %v247
    %v249 = vrot.slane %v244, %v248
    %v250 = vlaneseq
    %v251 = vshrl.u32 %v250, 7
    %v252 = vsub.s32 1, %v251
    %v253 = vrot.slane %v244, %v252
    %v254 = vlaneseq
    %v255 = vshrl.u32 %v254, 7
    %v256 = vsub.s32 2, %v255
    %v257 = vrot.slane %v244, %v256
    %v258 = vlaneseq
    %v259 = vshrl.u32 %v258, 7
    %v260 = vsub.s32 3, %v259
    %v261 = vrot.slane %v244, %v260
    %v262 = vlaneseq
    %v263 = vshrl.u32 %v262, 7
    %v264 = vsub.s32 4, %v263
    %v265 = vrot.slane %v244, %v264
    %v266 = vlaneseq
    %v267 = vshrl.u32 %v266, 7
    %v268 = vsub.s32 5, %v267
    %v269 = vrot.slane %v244, %v268
    %v270 = vlaneseq
    %v271 = vshrl.u32 %v270, 7
    %v272 = vsub.s32 6, %v271
    %v273 = vrot.slane %v244, %v272
    %v274 = vlaneseq
    %v275 = vshrl.u32 %v274, 7
    %v276 = vsub.s32 7, %v275
    %v277 = vrot.slane %v244, %v276
    %286 = vmatprep.subr.mxu0 %v117
    %287 = vmatpush1.msra.mxu0 %v116
    %288 = vmatprep.subr.mxu0 %v125
    %289 = vmatpush1.msra.mxu0 %v124
    %290 = vmatprep.subr.mxu0 %v133
    %291 = vmatpush1.msra.mxu0 %v132
    %292 = vmatprep.subr.mxu0 %v141
    %293 = vmatpush1.msra.mxu0 %v140
    %294 = vmatprep.subr.mxu0 %v149
    %295 = vmatpush1.msra.mxu0 %v148
    %296 = vmatprep.subr.mxu0 %v157
    %297 = vmatpush1.msra.mxu0 %v156
    %298 = vmatprep.subr.mxu0 %v165
    %299 = vmatpush1.msra.mxu0 %v164
    %300 = vmatprep.subr.mxu0 %v173
    %301 = vmatpush1.msra.mxu0 %v172
    %302 = vmatprep.subr.mxu0 %v181
    %303 = vmatpush1.msra.mxu0 %v180
    %304 = vmatprep.subr.mxu0 %v189
    %305 = vmatpush1.msra.mxu0 %v188
    %306 = vmatprep.subr.mxu0 %v197
    %307 = vmatpush1.msra.mxu0 %v196
    %308 = vmatprep.subr.mxu0 %v205
    %309 = vmatpush1.msra.mxu0 %v204
    %310 = vmatprep.subr.mxu0 %v213
    %311 = vmatpush1.msra.mxu0 %v212
    %312 = vmatprep.subr.mxu0 %v221
    %313 = vmatpush1.msra.mxu0 %v220
    %314 = vmatprep.subr.mxu0 %v229
    %315 = vmatpush1.msra.mxu0 %v228
    %316 = vmatprep.subr.mxu0 %v237
    %317 = vmatpush1.msra.mxu0 %v236
    %318 = vmatprep.subr.mxu0 0.0
    %319 = vmatpush1.msra.mxu0 0.0
    %320 = vmatprep.subr.mxu0 0.0
    %321 = vmatpush1.msra.mxu0 0.0
    %322 = vmatprep.subr.mxu0 0.0
    %323 = vmatpush1.msra.mxu0 0.0
    %324 = vmatprep.subr.mxu0 0.0
    %325 = vmatpush1.msra.mxu0 0.0
    %326 = vmatprep.subr.mxu0 0.0
    %327 = vmatpush1.msra.mxu0 0.0
    %328 = vmatprep.subr.mxu0 0.0
    %329 = vmatpush1.msra.mxu0 0.0
    %330 = vmatprep.subr.mxu0 0.0
    %331 = vmatpush1.msra.mxu0 0.0
    %332 = vmatprep.subr.mxu0 0.0
    %333 = vmatpush1.msra.mxu0 0.0
    %334 = vmatprep.subr.mxu0 0.0
    %335 = vmatpush1.msra.mxu0 0.0
    %336 = vmatprep.subr.mxu0 0.0
    %337 = vmatpush1.msra.mxu0 0.0
    %338 = vmatprep.subr.mxu0 0.0
    %339 = vmatpush1.msra.mxu0 0.0
    %340 = vmatprep.subr.mxu0 0.0
    %341 = vmatpush1.msra.mxu0 0.0
    %342 = vmatprep.subr.mxu0 0.0
    %343 = vmatpush1.msra.mxu0 0.0
    %344 = vmatprep.subr.mxu0 0.0
    %345 = vmatpush1.msra.mxu0 0.0
    %346 = vmatprep.subr.mxu0 0.0
    %347 = vmatpush1.msra.mxu0 0.0
    %348 = vmatprep.subr.mxu0 0.0
    %349 = vmatpush1.msra.mxu0 0.0
    %350 = vmatprep.mubr.f32.mxu0 0.0
    %351 = vmatmul.mubr.f32.gmra.mrb[0].mxu0 %v115
    %v352 = vpop.f32.mrb[0].mxu0
    %v353 = vadd.f32 %v249, %v352
    %v354 = vpop.f32.mrb[0].mxu0
    %v355 = vadd.f32 %v253, %v354
    %356 = vdwg.mxu0
    %357 = vmatprep.subr.mxu0 %v119
    %358 = vmatpush1.msra.mxu0 %v118
    %359 = vmatprep.subr.mxu0 %v127
    %360 = vmatpush1.msra.mxu0 %v126
    %361 = vmatprep.subr.mxu0 %v135
    %362 = vmatpush1.msra.mxu0 %v134
    %363 = vmatprep.subr.mxu0 %v143
    %364 = vmatpush1.msra.mxu0 %v142
    %365 = vmatprep.subr.mxu0 %v151
    %366 = vmatpush1.msra.mxu0 %v150
    %367 = vmatprep.subr.mxu0 %v159
    %368 = vmatpush1.msra.mxu0 %v158
    %369 = vmatprep.subr.mxu0 %v167
    %370 = vmatpush1.msra.mxu0 %v166
    %371 = vmatprep.subr.mxu0 %v175
    %372 = vmatpush1.msra.mxu0 %v174
    %373 = vmatprep.subr.mxu0 %v183
    %374 = vmatpush1.msra.mxu0 %v182
    %375 = vmatprep.subr.mxu0 %v191
    %376 = vmatpush1.msra.mxu0 %v190
    %377 = vmatprep.subr.mxu0 %v199
    %378 = vmatpush1.msra.mxu0 %v198
    %379 = vmatprep.subr.mxu0 %v207
    %380 = vmatpush1.msra.mxu0 %v206
    %381 = vmatprep.subr.mxu0 %v215
    %382 = vmatpush1.msra.mxu0 %v214
    %383 = vmatprep.subr.mxu0 %v223
    %384 = vmatpush1.msra.mxu0 %v222
    %385 = vmatprep.subr.mxu0 %v231
    %386 = vmatpush1.msra.mxu0 %v230
    %387 = vmatprep.subr.mxu0 %v239
    %388 = vmatpush1.msra.mxu0 %v238
    %389 = vmatprep.subr.mxu0 0.0
    %390 = vmatpush1.msra.mxu0 0.0
    %391 = vmatprep.subr.mxu0 0.0
    %392 = vmatpush1.msra.mxu0 0.0
    %393 = vmatprep.subr.mxu0 0.0
    %394 = vmatpush1.msra.mxu0 0.0
    %395 = vmatprep.subr.mxu0 0.0
    %396 = vmatpush1.msra.mxu0 0.0
    %397 = vmatprep.subr.mxu0 0.0
    %398 = vmatpush1.msra.mxu0 0.0
    %399 = vmatprep.subr.mxu0 0.0
    %400 = vmatpush1.msra.mxu0 0.0
    %401 = vmatprep.subr.mxu0 0.0
    %402 = vmatpush1.msra.mxu0 0.0
    %403 = vmatprep.subr.mxu0 0.0
    %404 = vmatpush1.msra.mxu0 0.0
    %405 = vmatprep.subr.mxu0 0.0
    %406 = vmatpush1.msra.mxu0 0.0
    %407 = vmatprep.subr.mxu0 0.0
    %408 = vmatpush1.msra.mxu0 0.0
    %409 = vmatprep.subr.mxu0 0.0
    %410 = vmatpush1.msra.mxu0 0.0
    %411 = vmatprep.subr.mxu0 0.0
    %412 = vmatpush1.msra.mxu0 0.0
    %413 = vmatprep.subr.mxu0 0.0
    %414 = vmatpush1.msra.mxu0 0.0
    %415 = vmatprep.subr.mxu0 0.0
    %416 = vmatpush1.msra.mxu0 0.0
    %417 = vmatprep.subr.mxu0 0.0
    %418 = vmatpush1.msra.mxu0 0.0
    %419 = vmatprep.subr.mxu0 0.0
    %420 = vmatpush1.msra.mxu0 0.0
    %421 = vmatprep.mubr.f32.mxu0 0.0
    %422 = vmatmul.mubr.f32.gmra.mrb[0].mxu0 %v115
    %v423 = vpop.f32.mrb[0].mxu0
    %v424 = vadd.f32 %v257, %v423
    %v425 = vpop.f32.mrb[0].mxu0
    %v426 = vadd.f32 %v261, %v425
    %427 = vdwg.mxu0
    %428 = vmatprep.subr.mxu0 %v121
    %429 = vmatpush1.msra.mxu0 %v120
    %430 = vmatprep.subr.mxu0 %v129
    %431 = vmatpush1.msra.mxu0 %v128
    %432 = vmatprep.subr.mxu0 %v137
    %433 = vmatpush1.msra.mxu0 %v136
    %434 = vmatprep.subr.mxu0 %v145
    %435 = vmatpush1.msra.mxu0 %v144
    %436 = vmatprep.subr.mxu0 %v153
    %437 = vmatpush1.msra.mxu0 %v152
    %438 = vmatprep.subr.mxu0 %v161
    %439 = vmatpush1.msra.mxu0 %v160
    %440 = vmatprep.subr.mxu0 %v169
    %441 = vmatpush1.msra.mxu0 %v168
    %442 = vmatprep.subr.mxu0 %v177
    %443 = vmatpush1.msra.mxu0 %v176
    %444 = vmatprep.subr.mxu0 %v185
    %445 = vmatpush1.msra.mxu0 %v184
    %446 = vmatprep.subr.mxu0 %v193
    %447 = vmatpush1.msra.mxu0 %v192
    %448 = vmatprep.subr.mxu0 %v201
    %449 = vmatpush1.msra.mxu0 %v200
    %450 = vmatprep.subr.mxu0 %v209
    %451 = vmatpush1.msra.mxu0 %v208
    %452 = vmatprep.subr.mxu0 %v217
    %453 = vmatpush1.msra.mxu0 %v216
    %454 = vmatprep.subr.mxu0 %v225
    %455 = vmatpush1.msra.mxu0 %v224
    %456 = vmatprep.subr.mxu0 %v233
    %457 = vmatpush1.msra.mxu0 %v232
    %458 = vmatprep.subr.mxu0 %v241
    %459 = vmatpush1.msra.mxu0 %v240
    %460 = vmatprep.subr.mxu0 0.0
    %461 = vmatpush1.msra.mxu0 0.0
    %462 = vmatprep.subr.mxu0 0.0
    %463 = vmatpush1.msra.mxu0 0.0
    %464 = vmatprep.subr.mxu0 0.0
    %465 = vmatpush1.msra.mxu0 0.0
    %466 = vmatprep.subr.mxu0 0.0
    %467 = vmatpush1.msra.mxu0 0.0
    %468 = vmatprep.subr.mxu0 0.0
    %469 = vmatpush1.msra.mxu0 0.0
    %470 = vmatprep.subr.mxu0 0.0
    %471 = vmatpush1.msra.mxu0 0.0
    %472 = vmatprep.subr.mxu0 0.0
    %473 = vmatpush1.msra.mxu0 0.0
    %474 = vmatprep.subr.mxu0 0.0
    %475 = vmatpush1.msra.mxu0 0.0
    %476 = vmatprep.subr.mxu0 0.0
    %477 = vmatpush1.msra.mxu0 0.0
    %478 = vmatprep.subr.mxu0 0.0
    %479 = vmatpush1.msra.mxu0 0.0
    %480 = vmatprep.subr.mxu0 0.0
    %481 = vmatpush1.msra.mxu0 0.0
    %482 = vmatprep.subr.mxu0 0.0
    %483 = vmatpush1.msra.mxu0 0.0
    %484 = vmatprep.subr.mxu0 0.0
    %485 = vmatpush1.msra.mxu0 0.0
    %486 = vmatprep.subr.mxu0 0.0
    %487 = vmatpush1.msra.mxu0 0.0
    %488 = vmatprep.subr.mxu0 0.0
    %489 = vmatpush1.msra.mxu0 0.0
    %490 = vmatprep.subr.mxu0 0.0
    %491 = vmatpush1.msra.mxu0 0.0
    %492 = vmatprep.mubr.f32.mxu0 0.0
    %493 = vmatmul.mubr.f32.gmra.mrb[0].mxu0 %v115
    %v494 = vpop.f32.mrb[0].mxu0
    %v495 = vadd.f32 %v265, %v494
    %v496 = vpop.f32.mrb[0].mxu0
    %v497 = vadd.f32 %v269, %v496
    %498 = vdwg.mxu0
    %499 = vmatprep.subr.mxu0 %v123
    %500 = vmatpush1.msra.mxu0 %v122
    %501 = vmatprep.subr.mxu0 %v131
    %502 = vmatpush1.msra.mxu0 %v130
    %503 = vmatprep.subr.mxu0 %v139
    %504 = vmatpush1.msra.mxu0 %v138
    %505 = vmatprep.subr.mxu0 %v147
    %506 = vmatpush1.msra.mxu0 %v146
    %507 = vmatprep.subr.mxu0 %v155
    %508 = vmatpush1.msra.mxu0 %v154
    %509 = vmatprep.subr.mxu0 %v163
    %510 = vmatpush1.msra.mxu0 %v162
    %511 = vmatprep.subr.mxu0 %v171
    %512 = vmatpush1.msra.mxu0 %v170
    %513 = vmatprep.subr.mxu0 %v179
    %514 = vmatpush1.msra.mxu0 %v178
    %515 = vmatprep.subr.mxu0 %v187
    %516 = vmatpush1.msra.mxu0 %v186
    %517 = vmatprep.subr.mxu0 %v195
    %518 = vmatpush1.msra.mxu0 %v194
    %519 = vmatprep.subr.mxu0 %v203
    %520 = vmatpush1.msra.mxu0 %v202
    %521 = vmatprep.subr.mxu0 %v211
    %522 = vmatpush1.msra.mxu0 %v210
    %523 = vmatprep.subr.mxu0 %v219
    %524 = vmatpush1.msra.mxu0 %v218
    %525 = vmatprep.subr.mxu0 %v227
    %526 = vmatpush1.msra.mxu0 %v226
    %527 = vmatprep.subr.mxu0 %v235
    %528 = vmatpush1.msra.mxu0 %v234
    %529 = vmatprep.subr.mxu0 %v243
    %530 = vmatpush1.msra.mxu0 %v242
    %531 = vmatprep.subr.mxu0 0.0
    %532 = vmatpush1.msra.mxu0 0.0
    %533 = vmatprep.subr.mxu0 0.0
    %534 = vmatpush1.msra.mxu0 0.0
    %535 = vmatprep.subr.mxu0 0.0
    %536 = vmatpush1.msra.mxu0 0.0
    %537 = vmatprep.subr.mxu0 0.0
    %538 = vmatpush1.msra.mxu0 0.0
    %539 = vmatprep.subr.mxu0 0.0
    %540 = vmatpush1.msra.mxu0 0.0
    %541 = vmatprep.subr.mxu0 0.0
    %542 = vmatpush1.msra.mxu0 0.0
    %543 = vmatprep.subr.mxu0 0.0
    %544 = vmatpush1.msra.mxu0 0.0
    %545 = vmatprep.subr.mxu0 0.0
    %546 = vmatpush1.msra.mxu0 0.0
    %547 = vmatprep.subr.mxu0 0.0
    %548 = vmatpush1.msra.mxu0 0.0
    %549 = vmatprep.subr.mxu0 0.0
    %550 = vmatpush1.msra.mxu0 0.0
    %551 = vmatprep.subr.mxu0 0.0
    %552 = vmatpush1.msra.mxu0 0.0
    %553 = vmatprep.subr.mxu0 0.0
    %554 = vmatpush1.msra.mxu0 0.0
    %555 = vmatprep.subr.mxu0 0.0
    %556 = vmatpush1.msra.mxu0 0.0
    %557 = vmatprep.subr.mxu0 0.0
    %558 = vmatpush1.msra.mxu0 0.0
    %559 = vmatprep.subr.mxu0 0.0
    %560 = vmatpush1.msra.mxu0 0.0
    %561 = vmatprep.subr.mxu0 0.0
    %562 = vmatpush1.msra.mxu0 0.0
    %563 = vmatprep.mubr.f32.mxu0 0.0
    %564 = vmatmul.mubr.f32.gmra.mrb[0].mxu0 %v115
    %v565 = vpop.f32.mrb[0].mxu0
    %v566 = vadd.f32 %v273, %v565
    %v567 = vpop.f32.mrb[0].mxu0
    %v568 = vadd.f32 %v277, %v567
    %569 = vdwg.mxu0
    %v570 = vmax.f32 %v353, 0.0
    %v571 = vmax.f32 %v355, 0.0
    %v572 = vmax.f32 %v424, 0.0
    %v573 = vmax.f32 %v426, 0.0
    %v574 = vmax.f32 %v495, 0.0
    %v575 = vmax.f32 %v497, 0.0
    %v576 = vmax.f32 %v566, 0.0
    %v577 = vmax.f32 %v568, 0.0
    %v578 = vld [vmem:[#allocation7] sm:$0xff]
    %v579 = vld [vmem:[#allocation7 + $0x8] sm:$0xff]
    %v580 = vld [vmem:[#allocation7 + $0x10] sm:$0xff]
    %v581 = vld [vmem:[#allocation7 + $0x18] sm:$0xff]
    %v582 = vld [vmem:[#allocation7 + $0x20] sm:$0xff]
    %v583 = vld [vmem:[#allocation7 + $0x28] sm:$0xff]
    %v584 = vld [vmem:[#allocation7 + $0x30] sm:$0xff]
    %v585 = vld [vmem:[#allocation7 + $0x38] sm:$0xff]
    %v586 = vld [vmem:[#allocation7 + $0x40] sm:$0xff]
    %v587 = vld [vmem:[#allocation7 + $0x48] sm:$0xff]
    %v588 = vld [vmem:[#allocation7 + $0x50] sm:$0xff]
    %v589 = vld [vmem:[#allocation7 + $0x58] sm:$0xff]
    %v590 = vld [vmem:[#allocation7 + $0x60] sm:$0xff]
    %v591 = vld [vmem:[#allocation7 + $0x68] sm:$0xff]
    %v592 = vld [vmem:[#allocation7 + $0x70] sm:$0xff]
    %v593 = vld [vmem:[#allocation7 + $0x78] sm:$0xff]
    %v594 = vld [vmem:[#allocation7 + $0x80] sm:$0xff]
    %v595 = vld [vmem:[#allocation7 + $0x88] sm:$0xff]
    %v596 = vld [vmem:[#allocation7 + $0x90] sm:$0xff]
    %v597 = vld [vmem:[#allocation7 + $0x98] sm:$0xff]
    %v598 = vld [vmem:[#allocation7 + $0xa0] sm:$0xff]
    %v599 = vld [vmem:[#allocation7 + $0xa8] sm:$0xff]
    %v600 = vld [vmem:[#allocation7 + $0xb0] sm:$0xff]
    %v601 = vld [vmem:[#allocation7 + $0xb8] sm:$0xff]
    %v602 = vld [vmem:[#allocation7 + $0xc0] sm:$0xff]
    %v603 = vld [vmem:[#allocation7 + $0xc8] sm:$0xff]
    %v604 = vld [vmem:[#allocation7 + $0xd0] sm:$0xff]
    %v605 = vld [vmem:[#allocation7 + $0xd8] sm:$0xff]
    %v606 = vld [vmem:[#allocation7 + $0xe0] sm:$0xff]
    %v607 = vld [vmem:[#allocation7 + $0xe8] sm:$0xff]
    %v608 = vld [vmem:[#allocation7 + $0xf0] sm:$0xff]
    %v609 = vld [vmem:[#allocation7 + $0xf8] sm:$0xff]
    %v610 = vld [vmem:[#allocation7 + $0x100] sm:$0xff]
    %v611 = vld [vmem:[#allocation7 + $0x108] sm:$0xff]
    %v612 = vld [vmem:[#allocation7 + $0x110] sm:$0xff]
    %v613 = vld [vmem:[#allocation7 + $0x118] sm:$0xff]
    %v614 = vld [vmem:[#allocation7 + $0x120] sm:$0xff]
    %v615 = vld [vmem:[#allocation7 + $0x128] sm:$0xff]
    %v616 = vld [vmem:[#allocation7 + $0x130] sm:$0xff]
    %v617 = vld [vmem:[#allocation7 + $0x138] sm:$0xff]
    %v618 = vld [vmem:[#allocation7 + $0x140] sm:$0xff]
    %v619 = vld [vmem:[#allocation7 + $0x148] sm:$0xff]
    %v620 = vld [vmem:[#allocation7 + $0x150] sm:$0xff]
    %v621 = vld [vmem:[#allocation7 + $0x158] sm:$0xff]
    %v622 = vld [vmem:[#allocation7 + $0x160] sm:$0xff]
    %v623 = vld [vmem:[#allocation7 + $0x168] sm:$0xff]
    %v624 = vld [vmem:[#allocation7 + $0x170] sm:$0xff]
    %v625 = vld [vmem:[#allocation7 + $0x178] sm:$0xff]
    %v626 = vld [vmem:[#allocation7 + $0x180] sm:$0xff]
    %v627 = vld [vmem:[#allocation7 + $0x188] sm:$0xff]
    %v628 = vld [vmem:[#allocation7 + $0x190] sm:$0xff]
    %v629 = vld [vmem:[#allocation7 + $0x198] sm:$0xff]
    %v630 = vld [vmem:[#allocation7 + $0x1a0] sm:$0xff]
    %v631 = vld [vmem:[#allocation7 + $0x1a8] sm:$0xff]
    %v632 = vld [vmem:[#allocation7 + $0x1b0] sm:$0xff]
    %v633 = vld [vmem:[#allocation7 + $0x1b8] sm:$0xff]
    %v634 = vld [vmem:[#allocation7 + $0x1c0] sm:$0xff]
    %v635 = vld [vmem:[#allocation7 + $0x1c8] sm:$0xff]
    %v636 = vld [vmem:[#allocation7 + $0x1d0] sm:$0xff]
    %v637 = vld [vmem:[#allocation7 + $0x1d8] sm:$0xff]
    %v638 = vld [vmem:[#allocation7 + $0x1e0] sm:$0xff]
    %v639 = vld [vmem:[#allocation7 + $0x1e8] sm:$0xff]
    %v640 = vld [vmem:[#allocation7 + $0x1f0] sm:$0xff]
    %v641 = vld [vmem:[#allocation7 + $0x1f8] sm:$0xff]
    %v642 = vld [vmem:[#allocation7 + $0x200] sm:$0xff]
    %v643 = vld [vmem:[#allocation7 + $0x208] sm:$0xff]
    %v644 = vld [vmem:[#allocation7 + $0x210] sm:$0xff]
    %v645 = vld [vmem:[#allocation7 + $0x218] sm:$0xff]
    %v646 = vld [vmem:[#allocation7 + $0x220] sm:$0xff]
    %v647 = vld [vmem:[#allocation7 + $0x228] sm:$0xff]
    %v648 = vld [vmem:[#allocation7 + $0x230] sm:$0xff]
    %v649 = vld [vmem:[#allocation7 + $0x238] sm:$0xff]
    %v650 = vld [vmem:[#allocation7 + $0x240] sm:$0xff]
    %v651 = vld [vmem:[#allocation7 + $0x248] sm:$0xff]
    %v652 = vld [vmem:[#allocation7 + $0x250] sm:$0xff]
    %v653 = vld [vmem:[#allocation7 + $0x258] sm:$0xff]
    %v654 = vld [vmem:[#allocation7 + $0x260] sm:$0xff]
    %v655 = vld [vmem:[#allocation7 + $0x268] sm:$0xff]
    %v656 = vld [vmem:[#allocation7 + $0x270] sm:$0xff]
    %v657 = vld [vmem:[#allocation7 + $0x278] sm:$0xff]
    %v658 = vld [vmem:[#allocation7 + $0x280] sm:$0xff]
    %v659 = vld [vmem:[#allocation7 + $0x288] sm:$0xff]
    %v660 = vld [vmem:[#allocation7 + $0x290] sm:$0xff]
    %v661 = vld [vmem:[#allocation7 + $0x298] sm:$0xff]
    %v662 = vld [vmem:[#allocation7 + $0x2a0] sm:$0xff]
    %v663 = vld [vmem:[#allocation7 + $0x2a8] sm:$0xff]
    %v664 = vld [vmem:[#allocation7 + $0x2b0] sm:$0xff]
    %v665 = vld [vmem:[#allocation7 + $0x2b8] sm:$0xff]
    %v666 = vld [vmem:[#allocation7 + $0x2c0] sm:$0xff]
    %v667 = vld [vmem:[#allocation7 + $0x2c8] sm:$0xff]
    %v668 = vld [vmem:[#allocation7 + $0x2d0] sm:$0xff]
    %v669 = vld [vmem:[#allocation7 + $0x2d8] sm:$0xff]
    %v670 = vld [vmem:[#allocation7 + $0x2e0] sm:$0xff]
    %v671 = vld [vmem:[#allocation7 + $0x2e8] sm:$0xff]
    %v672 = vld [vmem:[#allocation7 + $0x2f0] sm:$0xff]
    %v673 = vld [vmem:[#allocation7 + $0x2f8] sm:$0xff]
    %v674 = vld [vmem:[#allocation7 + $0x300] sm:$0xff]
    %v675 = vld [vmem:[#allocation7 + $0x308] sm:$0xff]
    %v676 = vld [vmem:[#allocation7 + $0x310] sm:$0xff]
    %v677 = vld [vmem:[#allocation7 + $0x318] sm:$0xff]
    %v678 = vld [vmem:[#allocation7 + $0x320] sm:$0xff]
    %v679 = vld [vmem:[#allocation7 + $0x328] sm:$0xff]
    %v680 = vld [vmem:[#allocation7 + $0x330] sm:$0xff]
    %v681 = vld [vmem:[#allocation7 + $0x338] sm:$0xff]
    %v682 = vld [vmem:[#allocation7 + $0x340] sm:$0xff]
    %v683 = vld [vmem:[#allocation7 + $0x348] sm:$0xff]
    %v684 = vld [vmem:[#allocation7 + $0x350] sm:$0xff]
    %v685 = vld [vmem:[#allocation7 + $0x358] sm:$0xff]
    %v686 = vld [vmem:[#allocation7 + $0x360] sm:$0xff]
    %v687 = vld [vmem:[#allocation7 + $0x368] sm:$0xff]
    %v688 = vld [vmem:[#allocation7 + $0x370] sm:$0xff]
    %v689 = vld [vmem:[#allocation7 + $0x378] sm:$0xff]
    %v690 = vld [vmem:[#allocation7 + $0x380] sm:$0xff]
    %v691 = vld [vmem:[#allocation7 + $0x388] sm:$0xff]
    %v692 = vld [vmem:[#allocation7 + $0x390] sm:$0xff]
    %v693 = vld [vmem:[#allocation7 + $0x398] sm:$0xff]
    %v694 = vld [vmem:[#allocation7 + $0x3a0] sm:$0xff]
    %v695 = vld [vmem:[#allocation7 + $0x3a8] sm:$0xff]
    %v696 = vld [vmem:[#allocation7 + $0x3b0] sm:$0xff]
    %v697 = vld [vmem:[#allocation7 + $0x3b8] sm:$0xff]
    %v698 = vld [vmem:[#allocation7 + $0x3c0] sm:$0xff]
    %v699 = vld [vmem:[#allocation7 + $0x3c8] sm:$0xff]
    %v700 = vld [vmem:[#allocation7 + $0x3d0] sm:$0xff]
    %v701 = vld [vmem:[#allocation7 + $0x3d8] sm:$0xff]
    %v702 = vld [vmem:[#allocation7 + $0x3e0] sm:$0xff]
    %v703 = vld [vmem:[#allocation7 + $0x3e8] sm:$0xff]
    %v704 = vld [vmem:[#allocation7 + $0x3f0] sm:$0xff]
    %v705 = vld [vmem:[#allocation7 + $0x3f8] sm:$0xff]
    %v706 = vld [vmem:[#allocation7 + $0x400] sm:$0xff]
    %v707 = vld [vmem:[#allocation7 + $0x408] sm:$0xff]
    %v708 = vld [vmem:[#allocation7 + $0x410] sm:$0xff]
    %v709 = vld [vmem:[#allocation7 + $0x418] sm:$0xff]
    %v710 = vld [vmem:[#allocation7 + $0x420] sm:$0xff]
    %v711 = vld [vmem:[#allocation7 + $0x428] sm:$0xff]
    %v712 = vld [vmem:[#allocation7 + $0x430] sm:$0xff]
    %v713 = vld [vmem:[#allocation7 + $0x438] sm:$0xff]
    %v714 = vld [vmem:[#allocation7 + $0x440] sm:$0xff]
    %v715 = vld [vmem:[#allocation7 + $0x448] sm:$0xff]
    %v716 = vld [vmem:[#allocation7 + $0x450] sm:$0xff]
    %v717 = vld [vmem:[#allocation7 + $0x458] sm:$0xff]
    %v718 = vld [vmem:[#allocation7 + $0x460] sm:$0xff]
    %v719 = vld [vmem:[#allocation7 + $0x468] sm:$0xff]
    %v720 = vld [vmem:[#allocation7 + $0x470] sm:$0xff]
    %v721 = vld [vmem:[#allocation7 + $0x478] sm:$0xff]
    %v722 = vld [vmem:[#allocation7 + $0x480] sm:$0xff]
    %v723 = vld [vmem:[#allocation7 + $0x488] sm:$0xff]
    %v724 = vld [vmem:[#allocation7 + $0x490] sm:$0xff]
    %v725 = vld [vmem:[#allocation7 + $0x498] sm:$0xff]
    %v726 = vld [vmem:[#allocation7 + $0x4a0] sm:$0xff]
    %v727 = vld [vmem:[#allocation7 + $0x4a8] sm:$0xff]
    %v728 = vld [vmem:[#allocation9] sm:$0x7]
    %v730 = vlaneseq
    %v731 = vshrl.u32 %v730, 7
    %v732 = vsub.s32 0, %v731
    %v733 = vrot.slane %v728, %v732
    %v734 = vlaneseq
    %v735 = vshrl.u32 %v734, 7
    %v736 = vsub.s32 1, %v735
    %v737 = vrot.slane %v728, %v736
    %v738 = vlaneseq
    %v739 = vshrl.u32 %v738, 7
    %v740 = vsub.s32 2, %v739
    %v741 = vrot.slane %v728, %v740
    %vm745 = vcmask 130048
    %v747 = vsel %vm745, %v573, 0
    %749 = vmatprep.subr.mxu0 %v579
    %750 = vmatpush1.msra.mxu0 %v578
    %751 = vmatprep.subr.mxu0 %v582
    %752 = vmatpush1.msra.mxu0 %v581
    %753 = vmatprep.subr.mxu0 %v585
    %754 = vmatpush1.msra.mxu0 %v584
    %755 = vmatprep.subr.mxu0 %v588
    %756 = vmatpush1.msra.mxu0 %v587
    %757 = vmatprep.subr.mxu0 %v591
    %758 = vmatpush1.msra.mxu0 %v590
    %759 = vmatprep.subr.mxu0 %v594
    %760 = vmatpush1.msra.mxu0 %v593
    %761 = vmatprep.subr.mxu0 %v597
    %762 = vmatpush1.msra.mxu0 %v596
    %763 = vmatprep.subr.mxu0 %v600
    %764 = vmatpush1.msra.mxu0 %v599
    %765 = vmatprep.subr.mxu0 %v603
    %766 = vmatpush1.msra.mxu0 %v602
    %767 = vmatprep.subr.mxu0 %v606
    %768 = vmatpush1.msra.mxu0 %v605
    %769 = vmatprep.subr.mxu0 %v609
    %770 = vmatpush1.msra.mxu0 %v608
    %771 = vmatprep.subr.mxu0 %v612
    %772 = vmatpush1.msra.mxu0 %v611
    %773 = vmatprep.subr.mxu0 %v615
    %774 = vmatpush1.msra.mxu0 %v614
    %775 = vmatprep.subr.mxu0 %v618
    %776 = vmatpush1.msra.mxu0 %v617
    %777 = vmatprep.subr.mxu0 %v621
    %778 = vmatpush1.msra.mxu0 %v620
    %779 = vmatprep.subr.mxu0 %v624
    %780 = vmatpush1.msra.mxu0 %v623
    %781 = vmatprep.subr.mxu0 %v627
    %782 = vmatpush1.msra.mxu0 %v626
    %783 = vmatprep.subr.mxu0 %v630
    %784 = vmatpush1.msra.mxu0 %v629
    %785 = vmatprep.subr.mxu0 %v633
    %786 = vmatpush1.msra.mxu0 %v632
    %787 = vmatprep.subr.mxu0 %v636
    %788 = vmatpush1.msra.mxu0 %v635
    %789 = vmatprep.subr.mxu0 %v639
    %790 = vmatpush1.msra.mxu0 %v638
    %791 = vmatprep.subr.mxu0 %v642
    %792 = vmatpush1.msra.mxu0 %v641
    %793 = vmatprep.subr.mxu0 %v645
    %794 = vmatpush1.msra.mxu0 %v644
    %795 = vmatprep.subr.mxu0 %v648
    %796 = vmatpush1.msra.mxu0 %v647
    %797 = vmatprep.subr.mxu0 %v651
    %798 = vmatpush1.msra.mxu0 %v650
    %799 = vmatprep.subr.mxu0 %v654
    %800 = vmatpush1.msra.mxu0 %v653
    %801 = vmatprep.subr.mxu0 %v657
    %802 = vmatpush1.msra.mxu0 %v656
    %803 = vmatprep.subr.mxu0 %v660
    %804 = vmatpush1.msra.mxu0 %v659
    %805 = vmatprep.subr.mxu0 %v663
    %806 = vmatpush1.msra.mxu0 %v662
    %807 = vmatprep.subr.mxu0 %v666
    %808 = vmatpush1.msra.mxu0 %v665
    %809 = vmatprep.subr.mxu0 %v669
    %810 = vmatpush1.msra.mxu0 %v668
    %811 = vmatprep.subr.mxu0 %v672
    %812 = vmatpush1.msra.mxu0 %v671
    %813 = vmatprep.mubr.f32.mxu0 %v571
    %814 = vmatmul.mubr.f32.gmra.mrb[0].mxu0 %v570
    %v815 = vpop.f32.mrb[0].mxu0
    %v816 = vadd.f32 %v733, %v815
    %v817 = vpop.f32.mrb[0].mxu0
    %v818 = vadd.f32 %v737, %v817
    %819 = vdwg.mxu0
    %820 = vmatprep.subr.mxu0 %v675
    %821 = vmatpush1.msra.mxu0 %v674
    %822 = vmatprep.subr.mxu0 %v678
    %823 = vmatpush1.msra.mxu0 %v677
    %824 = vmatprep.subr.mxu0 %v681
    %825 = vmatpush1.msra.mxu0 %v680
    %826 = vmatprep.subr.mxu0 %v684
    %827 = vmatpush1.msra.mxu0 %v683
    %828 = vmatprep.subr.mxu0 %v687
    %829 = vmatpush1.msra.mxu0 %v686
    %830 = vmatprep.subr.mxu0 %v690
    %831 = vmatpush1.msra.mxu0 %v689
    %832 = vmatprep.subr.mxu0 %v693
    %833 = vmatpush1.msra.mxu0 %v692
    %834 = vmatprep.subr.mxu0 %v696
    %835 = vmatpush1.msra.mxu0 %v695
    %836 = vmatprep.subr.mxu0 %v699
    %837 = vmatpush1.msra.mxu0 %v698
    %838 = vmatprep.subr.mxu0 %v702
    %839 = vmatpush1.msra.mxu0 %v701
    %840 = vmatprep.subr.mxu0 %v705
    %841 = vmatpush1.msra.mxu0 %v704
    %842 = vmatprep.subr.mxu0 %v708
    %843 = vmatpush1.msra.mxu0 %v707
    %844 = vmatprep.subr.mxu0 %v711
    %845 = vmatpush1.msra.mxu0 %v710
    %846 = vmatprep.subr.mxu0 %v714
    %847 = vmatpush1.msra.mxu0 %v713
    %848 = vmatprep.subr.mxu0 %v717
    %849 = vmatpush1.msra.mxu0 %v716
    %850 = vmatprep.subr.mxu0 %v720
    %851 = vmatpush1.msra.mxu0 %v719
    %852 = vmatprep.subr.mxu0 %v723
    %853 = vmatpush1.msra.mxu0 %v722
    %854 = vmatprep.subr.mxu0 %v726
    %855 = vmatpush1.msra.mxu0 %v725
    %856 = vmatprep.subr.mxu0 0.0
    %857 = vmatpush1.msra.mxu0 0.0
    %858 = vmatprep.subr.mxu0 0.0
    %859 = vmatpush1.msra.mxu0 0.0
    %860 = vmatprep.subr.mxu0 0.0
    %861 = vmatpush1.msra.mxu0 0.0
    %862 = vmatprep.subr.mxu0 0.0
    %863 = vmatpush1.msra.mxu0 0.0
    %864 = vmatprep.subr.mxu0 0.0
    %865 = vmatpush1.msra.mxu0 0.0
    %866 = vmatprep.subr.mxu0 0.0
    %867 = vmatpush1.msra.mxu0 0.0
    %868 = vmatprep.subr.mxu0 0.0
    %869 = vmatpush1.msra.mxu0 0.0
    %870 = vmatprep.subr.mxu0 0.0
    %871 = vmatpush1.msra.mxu0 0.0
    %872 = vmatprep.subr.mxu0 0.0
    %873 = vmatpush1.msra.mxu0 0.0
    %874 = vmatprep.subr.mxu0 0.0
    %875 = vmatpush1.msra.mxu0 0.0
    %876 = vmatprep.subr.mxu0 0.0
    %877 = vmatpush1.msra.mxu0 0.0
    %878 = vmatprep.subr.mxu0 0.0
    %879 = vmatpush1.msra.mxu0 0.0
    %880 = vmatprep.subr.mxu0 0.0
    %881 = vmatpush1.msra.mxu0 0.0
    %882 = vmatprep.subr.mxu0 0.0
    %883 = vmatpush1.msra.mxu0 0.0
    %884 = vmatprep.mubr.f32.mxu0 %v747
    %885 = vmatmul.mubr.f32.gmra.mrb[0].mxu0 %v572
    %v886 = vpop.f32.mrb[0].mxu0
    %v887 = vadd.f32 %v816, %v886
    %v888 = vpop.f32.mrb[0].mxu0
    %v889 = vadd.f32 %v818, %v888
    %890 = vdwg.mxu0
    %891 = vmatprep.subr.mxu0 0.0
    %892 = vmatpush1.msra.mxu0 %v580
    %893 = vmatprep.subr.mxu0 0.0
    %894 = vmatpush1.msra.mxu0 %v583
    %895 = vmatprep.subr.mxu0 0.0
    %896 = vmatpush1.msra.mxu0 %v586
    %897 = vmatprep.subr.mxu0 0.0
    %898 = vmatpush1.msra.mxu0 %v589
    %899 = vmatprep.subr.mxu0 0.0
    %900 = vmatpush1.msra.mxu0 %v592
    %901 = vmatprep.subr.mxu0 0.0
    %902 = vmatpush1.msra.mxu0 %v595
    %903 = vmatprep.subr.mxu0 0.0
    %904 = vmatpush1.msra.mxu0 %v598
    %905 = vmatprep.subr.mxu0 0.0
    %906 = vmatpush1.msra.mxu0 %v601
    %907 = vmatprep.subr.mxu0 0.0
    %908 = vmatpush1.msra.mxu0 %v604
    %909 = vmatprep.subr.mxu0 0.0
    %910 = vmatpush1.msra.mxu0 %v607
    %911 = vmatprep.subr.mxu0 0.0
    %912 = vmatpush1.msra.mxu0 %v610
    %913 = vmatprep.subr.mxu0 0.0
    %914 = vmatpush1.msra.mxu0 %v613
    %915 = vmatprep.subr.mxu0 0.0
    %916 = vmatpush1.msra.mxu0 %v616
    %917 = vmatprep.subr.mxu0 0.0
    %918 = vmatpush1.msra.mxu0 %v619
    %919 = vmatprep.subr.mxu0 0.0
    %920 = vmatpush1.msra.mxu0 %v622
    %921 = vmatprep.subr.mxu0 0.0
    %922 = vmatpush1.msra.mxu0 %v625
    %923 = vmatprep.subr.mxu0 0.0
    %924 = vmatpush1.msra.mxu0 %v628
    %925 = vmatprep.subr.mxu0 0.0
    %926 = vmatpush1.msra.mxu0 %v631
    %927 = vmatprep.subr.mxu0 0.0
    %928 = vmatpush1.msra.mxu0 %v634
    %929 = vmatprep.subr.mxu0 0.0
    %930 = vmatpush1.msra.mxu0 %v637
    %931 = vmatprep.subr.mxu0 0.0
    %932 = vmatpush1.msra.mxu0 %v640
    %933 = vmatprep.subr.mxu0 0.0
    %934 = vmatpush1.msra.mxu0 %v643
    %935 = vmatprep.subr.mxu0 0.0
    %936 = vmatpush1.msra.mxu0 %v646
    %937 = vmatprep.subr.mxu0 0.0
    %938 = vmatpush1.msra.mxu0 %v649
    %939 = vmatprep.subr.mxu0 0.0
    %940 = vmatpush1.msra.mxu0 %v652
    %941 = vmatprep.subr.mxu0 0.0
    %942 = vmatpush1.msra.mxu0 %v655
    %943 = vmatprep.subr.mxu0 0.0
    %944 = vmatpush1.msra.mxu0 %v658
    %945 = vmatprep.subr.mxu0 0.0
    %946 = vmatpush1.msra.mxu0 %v661
    %947 = vmatprep.subr.mxu0 0.0
    %948 = vmatpush1.msra.mxu0 %v664
    %949 = vmatprep.subr.mxu0 0.0
    %950 = vmatpush1.msra.mxu0 %v667
    %951 = vmatprep.subr.mxu0 0.0
    %952 = vmatpush1.msra.mxu0 %v670
    %953 = vmatprep.subr.mxu0 0.0
    %954 = vmatpush1.msra.mxu0 %v673
    %955 = vmatprep.mubr.f32.mxu0 %v571
    %956 = vmatmul.mubr.f32.gmra.mrb[0].mxu0 %v570
    %v957 = vpop.f32.mrb[0].mxu0
    %v958 = vadd.f32 %v741, %v957
    %v959 = vpop.f32.mrb[0].mxu0
    %960 = vdwg.mxu0
    %961 = vmatprep.subr.mxu0 0.0
    %962 = vmatpush1.msra.mxu0 %v676
    %963 = vmatprep.subr.mxu0 0.0
    %964 = vmatpush1.msra.mxu0 %v679
    %965 = vmatprep.subr.mxu0 0.0
    %966 = vmatpush1.msra.mxu0 %v682
    %967 = vmatprep.subr.mxu0 0.0
    %968 = vmatpush1.msra.mxu0 %v685
    %969 = vmatprep.subr.mxu0 0.0
    %970 = vmatpush1.msra.mxu0 %v688
    %971 = vmatprep.subr.mxu0 0.0
    %972 = vmatpush1.msra.mxu0 %v691
    %973 = vmatprep.subr.mxu0 0.0
    %974 = vmatpush1.msra.mxu0 %v694
    %975 = vmatprep.subr.mxu0 0.0
    %976 = vmatpush1.msra.mxu0 %v697
    %977 = vmatprep.subr.mxu0 0.0
    %978 = vmatpush1.msra.mxu0 %v700
    %979 = vmatprep.subr.mxu0 0.0
    %980 = vmatpush1.msra.mxu0 %v703
    %981 = vmatprep.subr.mxu0 0.0
    %982 = vmatpush1.msra.mxu0 %v706
    %983 = vmatprep.subr.mxu0 0.0
    %984 = vmatpush1.msra.mxu0 %v709
    %985 = vmatprep.subr.mxu0 0.0
    %986 = vmatpush1.msra.mxu0 %v712
    %987 = vmatprep.subr.mxu0 0.0
    %988 = vmatpush1.msra.mxu0 %v715
    %989 = vmatprep.subr.mxu0 0.0
    %990 = vmatpush1.msra.mxu0 %v718
    %991 = vmatprep.subr.mxu0 0.0
    %992 = vmatpush1.msra.mxu0 %v721
    %993 = vmatprep.subr.mxu0 0.0
    %994 = vmatpush1.msra.mxu0 %v724
    %995 = vmatprep.subr.mxu0 0.0
    %996 = vmatpush1.msra.mxu0 %v727
    %997 = vmatprep.subr.mxu0 0.0
    %998 = vmatpush1.msra.mxu0 0.0
    %999 = vmatprep.subr.mxu0 0.0
    %1000 = vmatpush1.msra.mxu0 0.0
    %1001 = vmatprep.subr.mxu0 0.0
    %1002 = vmatpush1.msra.mxu0 0.0
    %1003 = vmatprep.subr.mxu0 0.0
    %1004 = vmatpush1.msra.mxu0 0.0
    %1005 = vmatprep.subr.mxu0 0.0
    %1006 = vmatpush1.msra.mxu0 0.0
    %1007 = vmatprep.subr.mxu0 0.0
    %1008 = vmatpush1.msra.mxu0 0.0
    %1009 = vmatprep.subr.mxu0 0.0
    %1010 = vmatpush1.msra.mxu0 0.0
    %1011 = vmatprep.subr.mxu0 0.0
    %1012 = vmatpush1.msra.mxu0 0.0
    %1013 = vmatprep.subr.mxu0 0.0
    %1014 = vmatpush1.msra.mxu0 0.0
    %1015 = vmatprep.subr.mxu0 0.0
    %1016 = vmatpush1.msra.mxu0 0.0
    %1017 = vmatprep.subr.mxu0 0.0
    %1018 = vmatpush1.msra.mxu0 0.0
    %1019 = vmatprep.subr.mxu0 0.0
    %1020 = vmatpush1.msra.mxu0 0.0
    %1021 = vmatprep.subr.mxu0 0.0
    %1022 = vmatpush1.msra.mxu0 0.0
    %1023 = vmatprep.subr.mxu0 0.0
    %1024 = vmatpush1.msra.mxu0 0.0
    %1025 = vmatprep.mubr.f32.mxu0 %v747
    %1026 = vmatmul.mubr.f32.gmra.mrb[0].mxu0 %v572
    %v1027 = vpop.f32.mrb[0].mxu0
    %v1028 = vadd.f32 %v958, %v1027
    %v1029 = vpop.f32.mrb[0].mxu0
    %1030 = vdwg.mxu0
    %v1031 = vmax.f32 %v887, 0.0
    %v1032 = vmax.f32 %v889, 0.0
    %v1033 = vmax.f32 %v1028, 0.0
    %s1034 = scalar_lea.vmem [#allocation7], 1200
    %v1035 = vld [vmem:[%s1034] sm:$0xff]
    %v1036 = vld [vmem:[%s1034 + $0x8] sm:$0xff]
    %v1037 = vld [vmem:[%s1034 + $0x10] sm:$0xff]
    %v1038 = vld [vmem:[%s1034 + $0x18] sm:$0xff]
    %v1039 = vld [vmem:[%s1034 + $0x20] sm:$0xff]
    %v1040 = vld [vmem:[%s1034 + $0x28] sm:$0xff]
    %v1041 = vld [vmem:[%s1034 + $0x30] sm:$0xff]
    %v1042 = vld [vmem:[%s1034 + $0x38] sm:$0xff]
    %v1043 = vld [vmem:[%s1034 + $0x40] sm:$0xff]
    %v1044 = vld [vmem:[%s1034 + $0x48] sm:$0xff]
    %v1045 = vld [vmem:[%s1034 + $0x50] sm:$0xff]
    %v1046 = vld [vmem:[%s1034 + $0x58] sm:$0xff]
    %v1047 = vld [vmem:[%s1034 + $0x60] sm:$0xff]
    %v1048 = vld [vmem:[%s1034 + $0x68] sm:$0xff]
    %v1049 = vld [vmem:[%s1034 + $0x70] sm:$0xff]
    %v1050 = vld [vmem:[%s1034 + $0x78] sm:$0xff]
    %v1051 = vld [vmem:[%s1034 + $0x80] sm:$0xff]
    %v1052 = vld [vmem:[%s1034 + $0x88] sm:$0xff]
    %v1053 = vld [vmem:[%s1034 + $0x90] sm:$0xff]
    %v1054 = vld [vmem:[%s1034 + $0x98] sm:$0xff]
    %v1055 = vld [vmem:[%s1034 + $0xa0] sm:$0xff]
    %v1056 = vld [vmem:[%s1034 + $0xa8] sm:$0xff]
    %v1057 = vld [vmem:[%s1034 + $0xb0] sm:$0xff]
    %v1058 = vld [vmem:[%s1034 + $0xb8] sm:$0xff]
    %v1059 = vld [vmem:[%s1034 + $0xc0] sm:$0xff]
    %v1060 = vld [vmem:[%s1034 + $0xc8] sm:$0xff]
    %v1061 = vld [vmem:[%s1034 + $0xd0] sm:$0xff]
    %v1062 = vld [vmem:[%s1034 + $0xd8] sm:$0xff]
    %v1063 = vld [vmem:[%s1034 + $0xe0] sm:$0xff]
    %v1064 = vld [vmem:[%s1034 + $0xe8] sm:$0xff]
    %v1065 = vld [vmem:[%s1034 + $0xf0] sm:$0xff]
    %v1066 = vld [vmem:[%s1034 + $0xf8] sm:$0xff]
    %v1067 = vld [vmem:[%s1034 + $0x100] sm:$0xff]
    %v1068 = vld [vmem:[%s1034 + $0x108] sm:$0xff]
    %v1069 = vld [vmem:[%s1034 + $0x110] sm:$0xff]
    %v1070 = vld [vmem:[%s1034 + $0x118] sm:$0xff]
    %v1071 = vld [vmem:[%s1034 + $0x120] sm:$0xff]
    %v1072 = vld [vmem:[%s1034 + $0x128] sm:$0xff]
    %v1073 = vld [vmem:[%s1034 + $0x130] sm:$0xff]
    %v1074 = vld [vmem:[%s1034 + $0x138] sm:$0xff]
    %v1075 = vld [vmem:[%s1034 + $0x140] sm:$0xff]
    %v1076 = vld [vmem:[%s1034 + $0x148] sm:$0xff]
    %v1077 = vld [vmem:[%s1034 + $0x150] sm:$0xff]
    %v1078 = vld [vmem:[%s1034 + $0x158] sm:$0xff]
    %v1079 = vld [vmem:[%s1034 + $0x160] sm:$0xff]
    %v1080 = vld [vmem:[%s1034 + $0x168] sm:$0xff]
    %v1081 = vld [vmem:[%s1034 + $0x170] sm:$0xff]
    %v1082 = vld [vmem:[%s1034 + $0x178] sm:$0xff]
    %v1083 = vld [vmem:[%s1034 + $0x180] sm:$0xff]
    %v1084 = vld [vmem:[%s1034 + $0x188] sm:$0xff]
    %v1085 = vld [vmem:[%s1034 + $0x190] sm:$0xff]
    %v1086 = vld [vmem:[%s1034 + $0x198] sm:$0xff]
    %v1087 = vld [vmem:[%s1034 + $0x1a0] sm:$0xff]
    %v1088 = vld [vmem:[%s1034 + $0x1a8] sm:$0xff]
    %v1089 = vld [vmem:[%s1034 + $0x1b0] sm:$0xff]
    %v1090 = vld [vmem:[%s1034 + $0x1b8] sm:$0xff]
    %v1091 = vld [vmem:[%s1034 + $0x1c0] sm:$0xff]
    %v1092 = vld [vmem:[%s1034 + $0x1c8] sm:$0xff]
    %v1093 = vld [vmem:[%s1034 + $0x1d0] sm:$0xff]
    %v1094 = vld [vmem:[%s1034 + $0x1d8] sm:$0xff]
    %v1095 = vld [vmem:[%s1034 + $0x1e0] sm:$0xff]
    %v1096 = vld [vmem:[%s1034 + $0x1e8] sm:$0xff]
    %v1097 = vld [vmem:[%s1034 + $0x1f0] sm:$0xff]
    %v1098 = vld [vmem:[%s1034 + $0x1f8] sm:$0xff]
    %v1099 = vld [vmem:[%s1034 + $0x200] sm:$0xff]
    %v1100 = vld [vmem:[%s1034 + $0x208] sm:$0xff]
    %v1101 = vld [vmem:[%s1034 + $0x210] sm:$0xff]
    %v1102 = vld [vmem:[%s1034 + $0x218] sm:$0xff]
    %v1103 = vld [vmem:[%s1034 + $0x220] sm:$0xff]
    %v1104 = vld [vmem:[%s1034 + $0x228] sm:$0xff]
    %v1105 = vld [vmem:[%s1034 + $0x230] sm:$0xff]
    %v1106 = vld [vmem:[%s1034 + $0x238] sm:$0xff]
    %v1107 = vld [vmem:[%s1034 + $0x240] sm:$0xff]
    %v1108 = vld [vmem:[%s1034 + $0x248] sm:$0xff]
    %v1109 = vld [vmem:[%s1034 + $0x250] sm:$0xff]
    %v1110 = vld [vmem:[%s1034 + $0x258] sm:$0xff]
    %v1111 = vld [vmem:[%s1034 + $0x260] sm:$0xff]
    %v1112 = vld [vmem:[%s1034 + $0x268] sm:$0xff]
    %v1113 = vld [vmem:[%s1034 + $0x270] sm:$0xff]
    %v1114 = vld [vmem:[%s1034 + $0x278] sm:$0xff]
    %v1115 = vld [vmem:[%s1034 + $0x280] sm:$0xff]
    %v1116 = vld [vmem:[%s1034 + $0x288] sm:$0xff]
    %v1117 = vld [vmem:[%s1034 + $0x290] sm:$0xff]
    %v1118 = vld [vmem:[%s1034 + $0x298] sm:$0xff]
    %v1119 = vld [vmem:[%s1034 + $0x2a0] sm:$0xff]
    %v1120 = vld [vmem:[%s1034 + $0x2a8] sm:$0xff]
    %v1121 = vld [vmem:[%s1034 + $0x2b0] sm:$0xff]
    %v1122 = vld [vmem:[%s1034 + $0x2b8] sm:$0xff]
    %v1123 = vld [vmem:[%s1034 + $0x2c0] sm:$0xff]
    %v1124 = vld [vmem:[%s1034 + $0x2c8] sm:$0xff]
    %v1125 = vld [vmem:[%s1034 + $0x2d0] sm:$0xff]
    %v1126 = vld [vmem:[%s1034 + $0x2d8] sm:$0xff]
    %v1127 = vld [vmem:[%s1034 + $0x2e0] sm:$0xff]
    %v1128 = vld [vmem:[%s1034 + $0x2e8] sm:$0xff]
    %v1129 = vld [vmem:[%s1034 + $0x2f0] sm:$0xff]
    %v1130 = vld [vmem:[%s1034 + $0x2f8] sm:$0xff]
    %v1131 = vld [vmem:[%s1034 + $0x300] sm:$0xff]
    %v1132 = vld [vmem:[%s1034 + $0x308] sm:$0xff]
    %v1133 = vld [vmem:[%s1034 + $0x310] sm:$0xff]
    %v1134 = vld [vmem:[%s1034 + $0x318] sm:$0xff]
    %v1135 = vld [vmem:[%s1034 + $0x320] sm:$0xff]
    %v1136 = vld [vmem:[%s1034 + $0x328] sm:$0xff]
    %v1137 = vld [vmem:[%s1034 + $0x330] sm:$0xff]
    %v1138 = vld [vmem:[%s1034 + $0x338] sm:$0xff]
    %v1139 = vld [vmem:[%s1034 + $0x340] sm:$0xff]
    %v1140 = vld [vmem:[%s1034 + $0x348] sm:$0xff]
    %v1141 = vld [vmem:[%s1034 + $0x350] sm:$0xff]
    %v1142 = vld [vmem:[%s1034 + $0x358] sm:$0xff]
    %v1143 = vld [vmem:[%s1034 + $0x360] sm:$0xff]
    %v1144 = vld [vmem:[%s1034 + $0x368] sm:$0xff]
    %v1145 = vld [vmem:[%s1034 + $0x370] sm:$0xff]
    %v1146 = vld [vmem:[%s1034 + $0x378] sm:$0xff]
    %v1147 = vld [vmem:[%s1034 + $0x380] sm:$0xff]
    %v1148 = vld [vmem:[%s1034 + $0x388] sm:$0xff]
    %v1149 = vld [vmem:[%s1034 + $0x390] sm:$0xff]
    %v1150 = vld [vmem:[%s1034 + $0x398] sm:$0xff]
    %v1151 = vld [vmem:[%s1034 + $0x3a0] sm:$0xff]
    %v1152 = vld [vmem:[%s1034 + $0x3a8] sm:$0xff]
    %v1153 = vld [vmem:[%s1034 + $0x3b0] sm:$0xff]
    %v1154 = vld [vmem:[%s1034 + $0x3b8] sm:$0xff]
    %v1155 = vld [vmem:[%s1034 + $0x3c0] sm:$0xff]
    %v1156 = vld [vmem:[%s1034 + $0x3c8] sm:$0xff]
    %v1157 = vld [vmem:[%s1034 + $0x3d0] sm:$0xff]
    %v1158 = vld [vmem:[%s1034 + $0x3d8] sm:$0xff]
    %v1159 = vld [vmem:[%s1034 + $0x3e0] sm:$0xff]
    %v1160 = vld [vmem:[%s1034 + $0x3e8] sm:$0xff]
    %v1161 = vld [vmem:[%s1034 + $0x3f0] sm:$0xff]
    %v1162 = vld [vmem:[%s1034 + $0x3f8] sm:$0xff]
    %v1163 = vld [vmem:[%s1034 + $0x400] sm:$0xff]
    %v1164 = vld [vmem:[%s1034 + $0x408] sm:$0xff]
    %v1165 = vld [vmem:[%s1034 + $0x410] sm:$0xff]
    %v1166 = vld [vmem:[%s1034 + $0x418] sm:$0xff]
    %v1167 = vld [vmem:[%s1034 + $0x420] sm:$0xff]
    %v1168 = vld [vmem:[%s1034 + $0x428] sm:$0xff]
    %v1169 = vld [vmem:[%s1034 + $0x430] sm:$0xff]
    %v1170 = vld [vmem:[%s1034 + $0x438] sm:$0xff]
    %v1171 = vld [vmem:[%s1034 + $0x440] sm:$0xff]
    %v1172 = vld [vmem:[%s1034 + $0x448] sm:$0xff]
    %v1173 = vld [vmem:[%s1034 + $0x450] sm:$0xff]
    %v1174 = vld [vmem:[%s1034 + $0x458] sm:$0xff]
    %v1175 = vld [vmem:[%s1034 + $0x460] sm:$0xff]
    %v1176 = vld [vmem:[%s1034 + $0x468] sm:$0xff]
    %v1177 = vld [vmem:[%s1034 + $0x470] sm:$0xff]
    %v1178 = vld [vmem:[%s1034 + $0x478] sm:$0xff]
    %v1179 = vld [vmem:[%s1034 + $0x480] sm:$0xff]
    %v1180 = vld [vmem:[%s1034 + $0x488] sm:$0xff]
    %v1181 = vld [vmem:[%s1034 + $0x490] sm:$0xff]
    %v1182 = vld [vmem:[%s1034 + $0x498] sm:$0xff]
    %v1183 = vld [vmem:[%s1034 + $0x4a0] sm:$0xff]
    %v1184 = vld [vmem:[%s1034 + $0x4a8] sm:$0xff]
    %s1185 = scalar_lea.vmem [#allocation9], 3
    %v1186 = vld [vmem:[%s1185] sm:$0x7]
    %v1188 = vlaneseq
    %v1189 = vshrl.u32 %v1188, 7
    %v1190 = vsub.s32 0, %v1189
    %v1191 = vrot.slane %v1186, %v1190
    %v1192 = vlaneseq
    %v1193 = vshrl.u32 %v1192, 7
    %v1194 = vsub.s32 1, %v1193
    %v1195 = vrot.slane %v1186, %v1194
    %v1196 = vlaneseq
    %v1197 = vshrl.u32 %v1196, 7
    %v1198 = vsub.s32 2, %v1197
    %v1199 = vrot.slane %v1186, %v1198
    %v1204 = vsel %vm745, %v577, 0
    %1206 = vmatprep.subr.mxu0 %v1036
    %1207 = vmatpush1.msra.mxu0 %v1035
    %1208 = vmatprep.subr.mxu0 %v1039
    %1209 = vmatpush1.msra.mxu0 %v1038
    %1210 = vmatprep.subr.mxu0 %v1042
    %1211 = vmatpush1.msra.mxu0 %v1041
    %1212 = vmatprep.subr.mxu0 %v1045
    %1213 = vmatpush1.msra.mxu0 %v1044
    %1214 = vmatprep.subr.mxu0 %v1048
    %1215 = vmatpush1.msra.mxu0 %v1047
    %1216 = vmatprep.subr.mxu0 %v1051
    %1217 = vmatpush1.msra.mxu0 %v1050
    %1218 = vmatprep.subr.mxu0 %v1054
    %1219 = vmatpush1.msra.mxu0 %v1053
    %1220 = vmatprep.subr.mxu0 %v1057
    %1221 = vmatpush1.msra.mxu0 %v1056
    %1222 = vmatprep.subr.mxu0 %v1060
    %1223 = vmatpush1.msra.mxu0 %v1059
    %1224 = vmatprep.subr.mxu0 %v1063
    %1225 = vmatpush1.msra.mxu0 %v1062
    %1226 = vmatprep.subr.mxu0 %v1066
    %1227 = vmatpush1.msra.mxu0 %v1065
    %1228 = vmatprep.subr.mxu0 %v1069
    %1229 = vmatpush1.msra.mxu0 %v1068
    %1230 = vmatprep.subr.mxu0 %v1072
    %1231 = vmatpush1.msra.mxu0 %v1071
    %1232 = vmatprep.subr.mxu0 %v1075
    %1233 = vmatpush1.msra.mxu0 %v1074
    %1234 = vmatprep.subr.mxu0 %v1078
    %1235 = vmatpush1.msra.mxu0 %v1077
    %1236 = vmatprep.subr.mxu0 %v1081
    %1237 = vmatpush1.msra.mxu0 %v1080
    %1238 = vmatprep.subr.mxu0 %v1084
    %1239 = vmatpush1.msra.mxu0 %v1083
    %1240 = vmatprep.subr.mxu0 %v1087
    %1241 = vmatpush1.msra.mxu0 %v1086
    %1242 = vmatprep.subr.mxu0 %v1090
    %1243 = vmatpush1.msra.mxu0 %v1089
    %1244 = vmatprep.subr.mxu0 %v1093
    %1245 = vmatpush1.msra.mxu0 %v1092
    %1246 = vmatprep.subr.mxu0 %v1096
    %1247 = vmatpush1.msra.mxu0 %v1095
    %1248 = vmatprep.subr.mxu0 %v1099
    %1249 = vmatpush1.msra.mxu0 %v1098
    %1250 = vmatprep.subr.mxu0 %v1102
    %1251 = vmatpush1.msra.mxu0 %v1101
    %1252 = vmatprep.subr.mxu0 %v1105
    %1253 = vmatpush1.msra.mxu0 %v1104
    %1254 = vmatprep.subr.mxu0 %v1108
    %1255 = vmatpush1.msra.mxu0 %v1107
    %1256 = vmatprep.subr.mxu0 %v1111
    %1257 = vmatpush1.msra.mxu0 %v1110
    %1258 = vmatprep.subr.mxu0 %v1114
    %1259 = vmatpush1.msra.mxu0 %v1113
    %1260 = vmatprep.subr.mxu0 %v1117
    %1261 = vmatpush1.msra.mxu0 %v1116
    %1262 = vmatprep.subr.mxu0 %v1120
    %1263 = vmatpush1.msra.mxu0 %v1119
    %1264 = vmatprep.subr.mxu0 %v1123
    %1265 = vmatpush1.msra.mxu0 %v1122
    %1266 = vmatprep.subr.mxu0 %v1126
    %1267 = vmatpush1.msra.mxu0 %v1125
    %1268 = vmatprep.subr.mxu0 %v1129
    %1269 = vmatpush1.msra.mxu0 %v1128
    %1270 = vmatprep.mubr.f32.mxu0 %v575
    %1271 = vmatmul.mubr.f32.gmra.mrb[0].mxu0 %v574
    %v1272 = vpop.f32.mrb[0].mxu0
    %v1273 = vadd.f32 %v1191, %v1272
    %v1274 = vpop.f32.mrb[0].mxu0
    %v1275 = vadd.f32 %v1195, %v1274
    %1276 = vdwg.mxu0
    %1277 = vmatprep.subr.mxu0 %v1132
    %1278 = vmatpush1.msra.mxu0 %v1131
    %1279 = vmatprep.subr.mxu0 %v1135
    %1280 = vmatpush1.msra.mxu0 %v1134
    %1281 = vmatprep.subr.mxu0 %v1138
    %1282 = vmatpush1.msra.mxu0 %v1137
    %1283 = vmatprep.subr.mxu0 %v1141
    %1284 = vmatpush1.msra.mxu0 %v1140
    %1285 = vmatprep.subr.mxu0 %v1144
    %1286 = vmatpush1.msra.mxu0 %v1143
    %1287 = vmatprep.subr.mxu0 %v1147
    %1288 = vmatpush1.msra.mxu0 %v1146
    %1289 = vmatprep.subr.mxu0 %v1150
    %1290 = vmatpush1.msra.mxu0 %v1149
    %1291 = vmatprep.subr.mxu0 %v1153
    %1292 = vmatpush1.msra.mxu0 %v1152
    %1293 = vmatprep.subr.mxu0 %v1156
    %1294 = vmatpush1.msra.mxu0 %v1155
    %1295 = vmatprep.subr.mxu0 %v1159
    %1296 = vmatpush1.msra.mxu0 %v1158
    %1297 = vmatprep.subr.mxu0 %v1162
    %1298 = vmatpush1.msra.mxu0 %v1161
    %1299 = vmatprep.subr.mxu0 %v1165
    %1300 = vmatpush1.msra.mxu0 %v1164
    %1301 = vmatprep.subr.mxu0 %v1168
    %1302 = vmatpush1.msra.mxu0 %v1167
    %1303 = vmatprep.subr.mxu0 %v1171
    %1304 = vmatpush1.msra.mxu0 %v1170
    %1305 = vmatprep.subr.mxu0 %v1174
    %1306 = vmatpush1.msra.mxu0 %v1173
    %1307 = vmatprep.subr.mxu0 %v1177
    %1308 = vmatpush1.msra.mxu0 %v1176
    %1309 = vmatprep.subr.mxu0 %v1180
    %1310 = vmatpush1.msra.mxu0 %v1179
    %1311 = vmatprep.subr.mxu0 %v1183
    %1312 = vmatpush1.msra.mxu0 %v1182
    %1313 = vmatprep.subr.mxu0 0.0
    %1314 = vmatpush1.msra.mxu0 0.0
    %1315 = vmatprep.subr.mxu0 0.0
    %1316 = vmatpush1.msra.mxu0 0.0
    %1317 = vmatprep.subr.mxu0 0.0
    %1318 = vmatpush1.msra.mxu0 0.0
    %1319 = vmatprep.subr.mxu0 0.0
    %1320 = vmatpush1.msra.mxu0 0.0
    %1321 = vmatprep.subr.mxu0 0.0
    %1322 = vmatpush1.msra.mxu0 0.0
    %1323 = vmatprep.subr.mxu0 0.0
    %1324 = vmatpush1.msra.mxu0 0.0
    %1325 = vmatprep.subr.mxu0 0.0
    %1326 = vmatpush1.msra.mxu0 0.0
    %1327 = vmatprep.subr.mxu0 0.0
    %1328 = vmatpush1.msra.mxu0 0.0
    %1329 = vmatprep.subr.mxu0 0.0
    %1330 = vmatpush1.msra.mxu0 0.0
    %1331 = vmatprep.subr.mxu0 0.0
    %1332 = vmatpush1.msra.mxu0 0.0
    %1333 = vmatprep.subr.mxu0 0.0
    %1334 = vmatpush1.msra.mxu0 0.0
    %1335 = vmatprep.subr.mxu0 0.0
    %1336 = vmatpush1.msra.mxu0 0.0
    %1337 = vmatprep.subr.mxu0 0.0
    %1338 = vmatpush1.msra.mxu0 0.0
    %1339 = vmatprep.subr.mxu0 0.0
    %1340 = vmatpush1.msra.mxu0 0.0
    %1341 = vmatprep.mubr.f32.mxu0 %v1204
    %1342 = vmatmul.mubr.f32.gmra.mrb[0].mxu0 %v576
    %v1343 = vpop.f32.mrb[0].mxu0
    %v1344 = vadd.f32 %v1273, %v1343
    %v1345 = vpop.f32.mrb[0].mxu0
    %v1346 = vadd.f32 %v1275, %v1345
    %1347 = vdwg.mxu0
    %1348 = vmatprep.subr.mxu0 0.0
    %1349 = vmatpush1.msra.mxu0 %v1037
    %1350 = vmatprep.subr.mxu0 0.0
    %1351 = vmatpush1.msra.mxu0 %v1040
    %1352 = vmatprep.subr.mxu0 0.0
    %1353 = vmatpush1.msra.mxu0 %v1043
    %1354 = vmatprep.subr.mxu0 0.0
    %1355 = vmatpush1.msra.mxu0 %v1046
    %1356 = vmatprep.subr.mxu0 0.0
    %1357 = vmatpush1.msra.mxu0 %v1049
    %1358 = vmatprep.subr.mxu0 0.0
    %1359 = vmatpush1.msra.mxu0 %v1052
    %1360 = vmatprep.subr.mxu0 0.0
    %1361 = vmatpush1.msra.mxu0 %v1055
    %1362 = vmatprep.subr.mxu0 0.0
    %1363 = vmatpush1.msra.mxu0 %v1058
    %1364 = vmatprep.subr.mxu0 0.0
    %1365 = vmatpush1.msra.mxu0 %v1061
    %1366 = vmatprep.subr.mxu0 0.0
    %1367 = vmatpush1.msra.mxu0 %v1064
    %1368 = vmatprep.subr.mxu0 0.0
    %1369 = vmatpush1.msra.mxu0 %v1067
    %1370 = vmatprep.subr.mxu0 0.0
    %1371 = vmatpush1.msra.mxu0 %v1070
    %1372 = vmatprep.subr.mxu0 0.0
    %1373 = vmatpush1.msra.mxu0 %v1073
    %1374 = vmatprep.subr.mxu0 0.0
    %1375 = vmatpush1.msra.mxu0 %v1076
    %1376 = vmatprep.subr.mxu0 0.0
    %1377 = vmatpush1.msra.mxu0 %v1079
    %1378 = vmatprep.subr.mxu0 0.0
    %1379 = vmatpush1.msra.mxu0 %v1082
    %1380 = vmatprep.subr.mxu0 0.0
    %1381 = vmatpush1.msra.mxu0 %v1085
    %1382 = vmatprep.subr.mxu0 0.0
    %1383 = vmatpush1.msra.mxu0 %v1088
    %1384 = vmatprep.subr.mxu0 0.0
    %1385 = vmatpush1.msra.mxu0 %v1091
    %1386 = vmatprep.subr.mxu0 0.0
    %1387 = vmatpush1.msra.mxu0 %v1094
    %1388 = vmatprep.subr.mxu0 0.0
    %1389 = vmatpush1.msra.mxu0 %v1097
    %1390 = vmatprep.subr.mxu0 0.0
    %1391 = vmatpush1.msra.mxu0 %v1100
    %1392 = vmatprep.subr.mxu0 0.0
    %1393 = vmatpush1.msra.mxu0 %v1103
    %1394 = vmatprep.subr.mxu0 0.0
    %1395 = vmatpush1.msra.mxu0 %v1106
    %1396 = vmatprep.subr.mxu0 0.0
    %1397 = vmatpush1.msra.mxu0 %v1109
    %1398 = vmatprep.subr.mxu0 0.0
    %1399 = vmatpush1.msra.mxu0 %v1112
    %1400 = vmatprep.subr.mxu0 0.0
    %1401 = vmatpush1.msra.mxu0 %v1115
    %1402 = vmatprep.subr.mxu0 0.0
    %1403 = vmatpush1.msra.mxu0 %v1118
    %1404 = vmatprep.subr.mxu0 0.0
    %1405 = vmatpush1.msra.mxu0 %v1121
    %1406 = vmatprep.subr.mxu0 0.0
    %1407 = vmatpush1.msra.mxu0 %v1124
    %1408 = vmatprep.subr.mxu0 0.0
    %1409 = vmatpush1.msra.mxu0 %v1127
    %1410 = vmatprep.subr.mxu0 0.0
    %1411 = vmatpush1.msra.mxu0 %v1130
    %1412 = vmatprep.mubr.f32.mxu0 %v575
    %1413 = vmatmul.mubr.f32.gmra.mrb[0].mxu0 %v574
    %v1414 = vpop.f32.mrb[0].mxu0
    %v1415 = vadd.f32 %v1199, %v1414
    %v1416 = vpop.f32.mrb[0].mxu0
    %1417 = vdwg.mxu0
    %1418 = vmatprep.subr.mxu0 0.0
    %1419 = vmatpush1.msra.mxu0 %v1133
    %1420 = vmatprep.subr.mxu0 0.0
    %1421 = vmatpush1.msra.mxu0 %v1136
    %1422 = vmatprep.subr.mxu0 0.0
    %1423 = vmatpush1.msra.mxu0 %v1139
    %1424 = vmatprep.subr.mxu0 0.0
    %1425 = vmatpush1.msra.mxu0 %v1142
    %1426 = vmatprep.subr.mxu0 0.0
    %1427 = vmatpush1.msra.mxu0 %v1145
    %1428 = vmatprep.subr.mxu0 0.0
    %1429 = vmatpush1.msra.mxu0 %v1148
    %1430 = vmatprep.subr.mxu0 0.0
    %1431 = vmatpush1.msra.mxu0 %v1151
    %1432 = vmatprep.subr.mxu0 0.0
    %1433 = vmatpush1.msra.mxu0 %v1154
    %1434 = vmatprep.subr.mxu0 0.0
    %1435 = vmatpush1.msra.mxu0 %v1157
    %1436 = vmatprep.subr.mxu0 0.0
    %1437 = vmatpush1.msra.mxu0 %v1160
    %1438 = vmatprep.subr.mxu0 0.0
    %1439 = vmatpush1.msra.mxu0 %v1163
    %1440 = vmatprep.subr.mxu0 0.0
    %1441 = vmatpush1.msra.mxu0 %v1166
    %1442 = vmatprep.subr.mxu0 0.0
    %1443 = vmatpush1.msra.mxu0 %v1169
    %1444 = vmatprep.subr.mxu0 0.0
    %1445 = vmatpush1.msra.mxu0 %v1172
    %1446 = vmatprep.subr.mxu0 0.0
    %1447 = vmatpush1.msra.mxu0 %v1175
    %1448 = vmatprep.subr.mxu0 0.0
    %1449 = vmatpush1.msra.mxu0 %v1178
    %1450 = vmatprep.subr.mxu0 0.0
    %1451 = vmatpush1.msra.mxu0 %v1181
    %1452 = vmatprep.subr.mxu0 0.0
    %1453 = vmatpush1.msra.mxu0 %v1184
    %1454 = vmatprep.subr.mxu0 0.0
    %1455 = vmatpush1.msra.mxu0 0.0
    %1456 = vmatprep.subr.mxu0 0.0
    %1457 = vmatpush1.msra.mxu0 0.0
    %1458 = vmatprep.subr.mxu0 0.0
    %1459 = vmatpush1.msra.mxu0 0.0
    %1460 = vmatprep.subr.mxu0 0.0
    %1461 = vmatpush1.msra.mxu0 0.0
    %1462 = vmatprep.subr.mxu0 0.0
    %1463 = vmatpush1.msra.mxu0 0.0
    %1464 = vmatprep.subr.mxu0 0.0
    %1465 = vmatpush1.msra.mxu0 0.0
    %1466 = vmatprep.subr.mxu0 0.0
    %1467 = vmatpush1.msra.mxu0 0.0
    %1468 = vmatprep.subr.mxu0 0.0
    %1469 = vmatpush1.msra.mxu0 0.0
    %1470 = vmatprep.subr.mxu0 0.0
    %1471 = vmatpush1.msra.mxu0 0.0
    %1472 = vmatprep.subr.mxu0 0.0
    %1473 = vmatpush1.msra.mxu0 0.0
    %1474 = vmatprep.subr.mxu0 0.0
    %1475 = vmatpush1.msra.mxu0 0.0
    %1476 = vmatprep.subr.mxu0 0.0
    %1477 = vmatpush1.msra.mxu0 0.0
    %1478 = vmatprep.subr.mxu0 0.0
    %1479 = vmatpush1.msra.mxu0 0.0
    %1480 = vmatprep.subr.mxu0 0.0
    %1481 = vmatpush1.msra.mxu0 0.0
    %1482 = vmatprep.mubr.f32.mxu0 %v1204
    %1483 = vmatmul.mubr.f32.gmra.mrb[0].mxu0 %v576
    %v1484 = vpop.f32.mrb[0].mxu0
    %v1485 = vadd.f32 %v1415, %v1484
    %v1486 = vpop.f32.mrb[0].mxu0
    %1487 = vdwg.mxu0
    %v1488 = vmax.f32 %v1344, 0.0
    %v1489 = vmax.f32 %v1346, 0.0
    %v1490 = vmax.f32 %v1485, 0.0
    %v1491 = vld [vmem:[#allocation10] sm:$0x7]
    %v1493 = vlaneseq
    %v1494 = vshrl.u32 %v1493, 7
    %v1495 = vsub.s32 0, %v1494
    %v1496 = vrot.slane %v1491, %v1495
    %v1497 = vlaneseq
    %v1498 = vshrl.u32 %v1497, 7
    %v1499 = vsub.s32 1, %v1498
    %v1500 = vrot.slane %v1491, %v1499
    %v1501 = vlaneseq
    %v1502 = vshrl.u32 %v1501, 7
    %v1503 = vsub.s32 2, %v1502
    %v1504 = vrot.slane %v1491, %v1503
    %v1508 = vmul.f32 %v1031, %v1496
    %v1509 = vmul.f32 %v1032, %v1500
    %v1510 = vmul.f32 %v1033, %v1504
    %v1511 = vadd.f32 %v1508, %v1509
    %vm1512 = vcmask 359424
    %v1513 = vsel %vm1512, %v1510, 0.0
    %v1514 = vadd.f32 %v1511, %v1513
    %1515 = vadd.xlane.f32.xlu0 %v1514
    %v1516 = vpop.xlane.xlu0 %1515
    %s1517 = scalar_lea.vmem [#allocation10], 3
    %v1518 = vld [vmem:[%s1517] sm:$0x7]
    %v1520 = vlaneseq
    %v1521 = vshrl.u32 %v1520, 7
    %v1522 = vsub.s32 0, %v1521
    %v1523 = vrot.slane %v1518, %v1522
    %v1524 = vlaneseq
    %v1525 = vshrl.u32 %v1524, 7
    %v1526 = vsub.s32 1, %v1525
    %v1527 = vrot.slane %v1518, %v1526
    %v1528 = vlaneseq
    %v1529 = vshrl.u32 %v1528, 7
    %v1530 = vsub.s32 2, %v1529
    %v1531 = vrot.slane %v1518, %v1530
    %v1535 = vmul.f32 %v1488, %v1523
    %v1536 = vmul.f32 %v1489, %v1527
    %v1537 = vmul.f32 %v1490, %v1531
    %v1538 = vadd.f32 %v1535, %v1536
    %v1539 = vsel %vm1512, %v1537, 0.0
    %v1540 = vadd.f32 %v1538, %v1539
    %1541 = vadd.xlane.f32.xlu0 %v1540
    %v1542 = vpop.xlane.xlu0 %1541
    %vm1543 = vcmask 7168
    %v1544 = vsel %vm1543, %v1516, %v1542
    %v1545 = vld [vmem:[#allocation12] sm:$0x1]
    %v1547 = vlaneseq
    %v1548 = vshrl.u32 %v1547, 7
    %v1549 = vsub.s32 0, %v1548
    %v1550 = vrot.slane %v1545, %v1549
    %v1552 = vadd.f32 %v1544, %v1550
    %vm1553 = vcmask 15360
    %1554 = vst.msk [vmem:[%s7] sm:$0xff] %vm1553, %v1552
    // Predicated region
    $region58: #{tpu_custom_call.1} parent=1 // pred_check
      _
    $region59: #{tpu_custom_call.1} parent=1 // pred_check_branch
      %1556 = sbr.rel (0) target = $region61
    $region60: #{tpu_custom_call.1} parent=1 // pred_region
      _
    $region61: #{tpu_custom_call.1} parent=1 // pred_fallthru
      _
    // Predicated region
    $region62: #{tpu_custom_call.1} parent=1 // pred_check
      _
    $region63: #{tpu_custom_call.1} parent=1 // pred_check_branch
      %1558 = sbr.rel (0) target = $region65
    $region64: #{tpu_custom_call.1} parent=1 // pred_region
      _
    $region65: #{tpu_custom_call.1} parent=1 // pred_fallthru
      _
    %1559 = vsyncpa [#allocation3], 1
    %1560 = vsyncpa [#allocation5], 1
    %1561 = vsyncpa [#allocation8], 1
    %1562 = vsyncpa [#allocation11], 1

</llo_original>
